<compile_context>
chip_gen: v7x
topology: tpu7x:2x2x1
jax: 0.10.0
libtpu: 0.0.40
codegen_flags: <defaults>
</compile_context>

<pallas_src>
import jax
import jax.numpy as jnp
from jax.experimental import pallas as pl
from jax.experimental.pallas import tpu as pltpu

_EPS = 1e-5
_LANES = 128
_VMEM_LIMIT = 32 * 1024 * 1024          # explicit, v7x-safe scoped VMEM limit
_BLOCK_BUDGET_BYTES = 2 * 1024 * 1024   # target bytes per streamed activation block


def _round_up(x, m):
    return ((x + m - 1) // m) * m


def _pick_nb(n, l, cp):
    """Batch rows per grid step: biggest divisor of N under the VMEM budget."""
    row_bytes = l * cp * 2  # bf16 activation row
    nb_max = max(1, _BLOCK_BUDGET_BYTES // row_bytes)
    for cand in range(min(n, nb_max), 0, -1):
        if n % cand == 0:
            return cand
    return 1


# ---------------------------------------------------------------------------
# In-kernel helper: ConvTranspose1d(k=3, stride=1, padding=1, bias=False) on a
# (NB, L, Cp) bf16 block with channels on the lane axis.
#   out[l] = x[l+1] @ W[0] + x[l] @ W[1] + x[l-1] @ W[2]   (zero boundary taps)
# where W[k] = pytorch_weight[:, :, k] with shape (C_in, C_out).
# Returns the f32 accumulator flattened to (NB*L, Cp).
# ---------------------------------------------------------------------------
def _convt3(x_bf, w_ref, halo_ref):
    nb, L, Cp = x_bf.shape
    zrow = jnp.zeros((nb, 1, Cp), dtype=jnp.bfloat16)
    # bf16 halo: explicit zero boundary rows so the +/-1 taps are static
    # slices (no roll wraparound, no cross-block reads, no f32 round-trip).
    halo_ref[:, pl.ds(0, 1), :] = zrow
    halo_ref[:, pl.ds(L + 1, 1), :] = zrow
    halo_ref[:, pl.ds(1, L), :] = x_bf
    x_p = halo_ref[:, pl.ds(2, L), :].reshape(nb * L, Cp)   # x[l+1]
    x_m = halo_ref[:, pl.ds(0, L), :].reshape(nb * L, Cp)   # x[l-1]
    x_c = x_bf.reshape(nb * L, Cp)                          # x[l]
    # Three lane-dense bf16 MXU matmuls, f32 accumulation.
    y = jnp.dot(x_p, w_ref[0], preferred_element_type=jnp.float32)
    y = y + jnp.dot(x_c, w_ref[1], preferred_element_type=jnp.float32)
    y = y + jnp.dot(x_m, w_ref[2], preferred_element_type=jnp.float32)
    return y


def _emit_stats(y2d, st_ref):
    """Write per-block partial (sum, sumsq) into rows 0/1 of an (8, Cp) tile."""
    Cp = y2d.shape[1]
    s = jnp.sum(y2d, axis=0, keepdims=True)          # (1, Cp) f32
    ss = jnp.sum(y2d * y2d, axis=0, keepdims=True)   # (1, Cp) f32
    row = jax.lax.broadcasted_iota(jnp.int32, (8, Cp), 0)
    st_ref[...] = jnp.where(row == 0, s, jnp.where(row == 1, ss, 0.0))


# ---------------------------------------------------------------------------
# Kernels
# ---------------------------------------------------------------------------
def _pass_a_kernel(x_ref, w_ref, y_ref, st_ref, halo_ref):
    """y2 = convT2(x); emit per-block partial per-channel sum / sum-of-squares."""
    nb, L, Cp = x_ref.shape
    y2d = _convt3(x_ref[...], w_ref, halo_ref)                  # (nb*L, Cp) f32
    y_ref[...] = y2d.reshape(nb, L, Cp).astype(y_ref.dtype)      # bf16 store
    _emit_stats(y2d, st_ref)


def _pass_b_kernel(y2_ref, w_ref, scale_ref, shift_ref, y_ref, st_ref, halo_ref):
    """y1 = convT1(relu(bn2(y2))); emit per-block partial stats of y1."""
    nb, L, Cp = y2_ref.shape
    # BN apply + relu fused with the conv (f32 VPU math, bf16 only at the MXU).
    z = jnp.maximum(
        y2_ref[...].astype(jnp.float32) * scale_ref[...] + shift_ref[...], 0.0
    ).astype(jnp.bfloat16)
    y2d = _convt3(z, w_ref, halo_ref)
    y_ref[...] = y2d.reshape(nb, L, Cp).astype(y_ref.dtype)      # bf16 store
    _emit_stats(y2d, st_ref)


def _pass_c_kernel(y1_ref, x_ref, scale_ref, shift_ref, o_ref):
    """out = relu(bn1(y1) + identity)."""
    o_ref[...] = jnp.maximum(
        y1_ref[...].astype(jnp.float32) * scale_ref[...] + shift_ref[...]
        + x_ref[...].astype(jnp.float32),
        0.0,
    ).astype(o_ref.dtype)


# ---------------------------------------------------------------------------
# pallas_call wrappers
# ---------------------------------------------------------------------------
def _act_spec(nb, L, Cp):
    return pl.BlockSpec((nb, L, Cp), lambda i: (i, 0, 0))


def _vec_spec(Cp):
    # Constant index_map -> DMA'd into VMEM once, resident across the grid.
    return pl.BlockSpec((1, Cp), lambda i: (0, 0))


def _run_conv_stats(kernel, operands, nb):
    """Pass A or B: conv over NB batch rows per step + per-block partial stats."""
    act = operands[0]
    N, L, Cp = act.shape
    g = N // nb
    in_specs = [_act_spec(nb, L, Cp),
                pl.BlockSpec((3, Cp, Cp), lambda i: (0, 0, 0))]
    in_specs += [_vec_spec(Cp) for _ in operands[2:]]
    return pl.pallas_call(
        kernel,
        grid=(g,),
        in_specs=in_specs,
        out_specs=[
            _act_spec(nb, L, Cp),                           # conv output (bf16)
            pl.BlockSpec((None, 8, Cp), lambda i: (i, 0, 0)),  # partial stats
        ],
        out_shape=[
            jax.ShapeDtypeStruct((N, L, Cp), jnp.bfloat16),
            jax.ShapeDtypeStruct((g, 8, Cp), jnp.float32),
        ],
        scratch_shapes=[pltpu.VMEM((nb, L + 2, Cp), jnp.bfloat16)],  # halo buf
        compiler_params=pltpu.CompilerParams(
            # No resident accumulator -> the batch grid is fully parallel
            # (v7x megacore shards it across both TensorCores).
            dimension_semantics=("parallel",),
            vmem_limit_bytes=_VMEM_LIMIT,
        ),
    )(*operands)


def _run_pass_c(y1, xp, scale1, shift1, out_dtype, nb):
    N, L, Cp = y1.shape
    g = N // nb
    act = _act_spec(nb, L, Cp)
    vec = _vec_spec(Cp)
    return pl.pallas_call(
        _pass_c_kernel,
        grid=(g,),
        in_specs=[act, act, vec, vec],
        out_specs=act,
        out_shape=jax.ShapeDtypeStruct((N, L, Cp), out_dtype),
        compiler_params=pltpu.CompilerParams(
            dimension_semantics=("parallel",),
            vmem_limit_bytes=_VMEM_LIMIT,
        ),
    )(y1, xp, scale1, shift1)


def _bn_scale_shift(stats, gamma, beta, count, eps=_EPS):
    # Training-mode BatchNorm: reduce the per-block partial (sum, sumsq),
    # biased variance over (N, L), fold into a per-channel scale/shift that is
    # applied inside the next kernel.
    s = jnp.sum(stats[:, 0, :], axis=0)
    ss = jnp.sum(stats[:, 1, :], axis=0)
    mean = s / count
    var = jnp.maximum(ss / count - mean * mean, 0.0)
    scale = gamma * jax.lax.rsqrt(var + eps)
    shift = beta - mean * scale
    return scale.reshape(1, -1), shift.reshape(1, -1)


# ---------------------------------------------------------------------------
# Public entry points
# ---------------------------------------------------------------------------
def basic_block_dec_nlc(x_nlc, w2, gamma2, beta2, w1, gamma1, beta1):
    """BasicBlockDec forward in channels-last (N, L, C) layout.

    x_nlc  : (N, L, C) float32
    w2, w1 : PyTorch ConvTranspose1d weights, shape (C_in, C_out, 3)
    gamma*, beta* : BatchNorm1d affine parameters, shape (C,)

    For a full decoder, keep activations in NLC between blocks and call this
    directly (avoids the NCL<->NLC transposes of the adapter below).
    """
    N, L, C = x_nlc.shape
    Cp = _round_up(C, _LANES)
    pc = Cp - C
    nb = _pick_nb(N, L, Cp)

    # Lane-dense channels: zero-pad C to a multiple of 128. bf16 activations
    # through HBM (zero-padded weights keep the padded channels exactly zero).
    xp = jnp.pad(x_nlc, ((0, 0), (0, 0), (0, pc))).astype(jnp.bfloat16)

    def prep_w(w):
        # (C_in, C_out, K) -> (K, C_in, C_out); pad channels; bf16 for the MXU.
        wt = jnp.transpose(w, (2, 0, 1))
        wt = jnp.pad(wt, ((0, 0), (0, pc), (0, pc)))
        return wt.astype(jnp.bfloat16)

    def prep_v(v):
        return jnp.pad(v.astype(jnp.float32), (0, pc))   # (Cp,)

    w2t, w1t = prep_w(w2), prep_w(w1)
    g2, b2 = prep_v(gamma2), prep_v(beta2)
    g1, b1 = prep_v(gamma1), prep_v(beta1)

    count = float(N * L)   # BN training statistics span the full (N, L) extent

    # Pass A: y2 = convT2(x), plus per-block partial per-channel stats of y2.
    y2, st_a = _run_conv_stats(_pass_a_kernel, (xp, w2t), nb)
    scale2, shift2 = _bn_scale_shift(st_a, g2, b2, count)

    # Pass B: y1 = convT1(relu(bn2(y2))), plus partial stats of y1.
    y1, st_b = _run_conv_stats(_pass_b_kernel, (y2, w1t, scale2, shift2), nb)
    scale1, shift1 = _bn_scale_shift(st_b, g1, b1, count)

    # Pass C: out = relu(bn1(y1) + x).
    outp = _run_pass_c(y1, xp, scale1, shift1, x_nlc.dtype, nb)
    return outp[:, :, :C]


@jax.jit
def basic_block_dec(x_ncl, w2, gamma2, beta2, w1, gamma1, beta1):
    """PyTorch-parity adapter: (N, C, L) in / out."""
    x_nlc = jnp.transpose(x_ncl, (0, 2, 1))
    out = basic_block_dec_nlc(x_nlc, w2, gamma2, beta2, w1, gamma1, beta1)
    return jnp.transpose(out, (0, 2, 1))


# ---------------------------------------------------------------------------
# Pure-JAX (XLA) reference of the PyTorch forward, for verification.
# ---------------------------------------------------------------------------
def _reference(x, w2, g2, b2, w1, g1, b1, eps=_EPS):
    def convT(a, w):
        # ConvTranspose1d(k=3, s=1, p=1, bias=False) with PyTorch weight layout
        # (C_in, C_out, K) == cross-correlation with the flipped, transposed
        # kernel and padding 1.
        w_conv = jnp.transpose(jnp.flip(w, axis=2), (1, 0, 2))  # (C_out, C_in, K)
        return jax.lax.conv_general_dilated(
            a, w_conv, window_strides=(1,), padding=((1, 1),),
            dimension_numbers=("NCH", "OIH", "NCH"))

    def bn(a, g, b):
        mean = jnp.mean(a, axis=(0, 2), keepdims=True)
        var = jnp.var(a, axis=(0, 2), keepdims=True)   # biased, training-mode BN
        return (a - mean) * jax.lax.rsqrt(var + eps) * g[None, :, None] \
            + b[None, :, None]

    out = jnp.maximum(bn(convT(x, w2), g2, b2), 0.0)
    out = bn(convT(out, w1), g1, b1)
    return jnp.maximum(out + x, 0.0)


if __name__ == "__main__":
    key = jax.random.PRNGKey(0)
    kx, kw2, kw1, kg2, kb2, kg1, kb1 = jax.random.split(key, 7)

    N, C, L = 2, 8, 16          # batch, channels (inplanes == planes), length
    x = jax.random.normal(kx, (N, C, L), dtype=jnp.float32)
    w2 = 0.2 * jax.random.normal(kw2, (C, C, 3), dtype=jnp.float32)
    w1 = 0.2 * jax.random.normal(kw1, (C, C, 3), dtype=jnp.float32)
    g2 = 1.0 + 0.1 * jax.random.normal(kg2, (C,), dtype=jnp.float32)
    b2 = 0.1 * jax.random.normal(kb2, (C,), dtype=jnp.float32)
    g1 = 1.0 + 0.1 * jax.random.normal(kg1, (C,), dtype=jnp.float32)
    b1 = 0.1 * jax.random.normal(kb1, (C,), dtype=jnp.float32)

    out = jax.block_until_ready(basic_block_dec(x, w2, g2, b2, w1, g1, b1))
    ref = jax.block_until_ready(_reference(x, w2, g2, b2, w1, g1, b1))

    if out.shape != ref.shape or not bool(
            jnp.allclose(out, ref, atol=5e-2, rtol=5e-2)):
        raise AssertionError(
            "Pallas BasicBlockDec mismatch: max|diff| = "
            f"{float(jnp.max(jnp.abs(out - ref)))}")
    print("KERNEL_OK")
</pallas_src>

<mosaic_0001>
module attributes {stable_mosaic.version = 11 : i64} {
  func.func @_pass_a_kernel(%arg0: i32, %arg1: memref<2x16x128xbf16, #tpu.memory_space<vmem>>, %arg2: memref<3x128x128xbf16, #tpu.memory_space<vmem>>, %arg3: memref<2x16x128xbf16, #tpu.memory_space<vmem>>, %arg4: memref<1x8x128xf32, #tpu.memory_space<vmem>>, %arg5: memref<2x18x128xbf16, #tpu.memory_space<vmem>>) attributes {dimension_semantics = [#tpu.dimension_semantics<parallel>], iteration_bounds = array<i64: 1>, scalar_prefetch = 0 : i64, scratch_operands = 1 : i64, tpu.core_type = #tpu.core_type<tc>, window_params = [{transform_indices = @transform_0, window_bounds = array<i64: 2, 16, 128>}, {pipeline_mode = #tpu.pipeline_mode<synchronous>, transform_indices = @transform_1, window_bounds = array<i64: 3, 128, 128>}, {transform_indices = @transform_2, window_bounds = array<i64: 2, 16, 128>}, {transform_indices = @transform_3, window_bounds = array<i64: 1, 8, 128>}]} {
    %c0 = arith.constant 0 : index
    %c0_0 = arith.constant 0 : index
    %c0_1 = arith.constant 0 : index
    %0 = vector.load %arg1[%c0, %c0_0, %c0_1] : memref<2x16x128xbf16, #tpu.memory_space<vmem>>, vector<2x16x128xbf16>
    %cst = arith.constant 0.000000e+00 : bf16
    %1 = vector.broadcast %cst : bf16 to vector<2x1x128xbf16>
    %c0_2 = arith.constant 0 : index
    %c0_3 = arith.constant 0 : index
    %c0_4 = arith.constant 0 : index
    %2 = vector.load %arg5[%c0_2, %c0_3, %c0_4] : memref<2x18x128xbf16, #tpu.memory_space<vmem>>, vector<2x1x128xbf16>
    tpu.vector_store %arg5[%c0_2, %c0_3, %c0_4], %1 {strides = array<i32>} : memref<2x18x128xbf16, #tpu.memory_space<vmem>>, vector<2x1x128xbf16>,
    %c0_5 = arith.constant 0 : index
    %c17 = arith.constant 17 : index
    %c0_6 = arith.constant 0 : index
    %3 = vector.load %arg5[%c0_5, %c17, %c0_6] : memref<2x18x128xbf16, #tpu.memory_space<vmem>>, vector<2x1x128xbf16>
    tpu.vector_store %arg5[%c0_5, %c17, %c0_6], %1 {strides = array<i32>} : memref<2x18x128xbf16, #tpu.memory_space<vmem>>, vector<2x1x128xbf16>,
    %c0_7 = arith.constant 0 : index
    %c1 = arith.constant 1 : index
    %c0_8 = arith.constant 0 : index
    %4 = vector.load %arg5[%c0_7, %c1, %c0_8] : memref<2x18x128xbf16, #tpu.memory_space<vmem>>, vector<2x16x128xbf16>
    tpu.vector_store %arg5[%c0_7, %c1, %c0_8], %0 {strides = array<i32>} : memref<2x18x128xbf16, #tpu.memory_space<vmem>>, vector<2x16x128xbf16>,
    %c0_9 = arith.constant 0 : index
    %c2 = arith.constant 2 : index
    %c0_10 = arith.constant 0 : index
    %5 = vector.load %arg5[%c0_9, %c2, %c0_10] : memref<2x18x128xbf16, #tpu.memory_space<vmem>>, vector<2x16x128xbf16>
    %6 = vector.shape_cast %5 : vector<2x16x128xbf16> to vector<32x128xbf16>
    %c0_11 = arith.constant 0 : index
    %c0_12 = arith.constant 0 : index
    %c0_13 = arith.constant 0 : index
    %7 = vector.load %arg5[%c0_11, %c0_12, %c0_13] : memref<2x18x128xbf16, #tpu.memory_space<vmem>>, vector<2x16x128xbf16>
    %8 = vector.shape_cast %7 : vector<2x16x128xbf16> to vector<32x128xbf16>
    %9 = vector.shape_cast %0 : vector<2x16x128xbf16> to vector<32x128xbf16>
    %c0_14 = arith.constant 0 : index
    %c0_15 = arith.constant 0 : index
    %c0_16 = arith.constant 0 : index
    %10 = vector.load %arg2[%c0_14, %c0_15, %c0_16] : memref<3x128x128xbf16, #tpu.memory_space<vmem>>, vector<1x128x128xbf16>
    %11 = vector.shape_cast %10 : vector<1x128x128xbf16> to vector<128x128xbf16>
    %cst_17 = arith.constant dense<0.000000e+00> : vector<32x128xf32>
    %12 = tpu.matmul %6, %11, %cst_17 {dimension_numbers = #tpu.dot_dimension_numbers<[1], [0], [0], [1], [0, 0, 1, 1], [], []>} : vector<32x128xbf16>, vector<128x128xbf16>, vector<32x128xf32> -> vector<32x128xf32>
    %c1_18 = arith.constant 1 : index
    %c0_19 = arith.constant 0 : index
    %c0_20 = arith.constant 0 : index
    %13 = vector.load %arg2[%c1_18, %c0_19, %c0_20] : memref<3x128x128xbf16, #tpu.memory_space<vmem>>, vector<1x128x128xbf16>
    %14 = vector.shape_cast %13 : vector<1x128x128xbf16> to vector<128x128xbf16>
    %cst_21 = arith.constant dense<0.000000e+00> : vector<32x128xf32>
    %15 = tpu.matmul %9, %14, %cst_21 {dimension_numbers = #tpu.dot_dimension_numbers<[1], [0], [0], [1], [0, 0, 1, 1], [], []>} : vector<32x128xbf16>, vector<128x128xbf16>, vector<32x128xf32> -> vector<32x128xf32>
    %16 = arith.addf %12, %15 : vector<32x128xf32>
    %c2_22 = arith.constant 2 : index
    %c0_23 = arith.constant 0 : index
    %c0_24 = arith.constant 0 : index
    %17 = vector.load %arg2[%c2_22, %c0_23, %c0_24] : memref<3x128x128xbf16, #tpu.memory_space<vmem>>, vector<1x128x128xbf16>
    %18 = vector.shape_cast %17 : vector<1x128x128xbf16> to vector<128x128xbf16>
    %cst_25 = arith.constant dense<0.000000e+00> : vector<32x128xf32>
    %19 = tpu.matmul %8, %18, %cst_25 {dimension_numbers = #tpu.dot_dimension_numbers<[1], [0], [0], [1], [0, 0, 1, 1], [], []>} : vector<32x128xbf16>, vector<128x128xbf16>, vector<32x128xf32> -> vector<32x128xf32>
    %20 = arith.addf %16, %19 : vector<32x128xf32>
    %21 = vector.shape_cast %20 : vector<32x128xf32> to vector<2x16x128xf32>
    %22 = arith.truncf %21 : vector<2x16x128xf32> to vector<2x16x128xbf16>
    %c0_26 = arith.constant 0 : index
    %c0_27 = arith.constant 0 : index
    %c0_28 = arith.constant 0 : index
    %23 = vector.load %arg3[%c0_26, %c0_27, %c0_28] : memref<2x16x128xbf16, #tpu.memory_space<vmem>>, vector<2x16x128xbf16>
    tpu.vector_store %arg3[%c0_26, %c0_27, %c0_28], %22 {strides = array<i32>} : memref<2x16x128xbf16, #tpu.memory_space<vmem>>, vector<2x16x128xbf16>,
    %cst_29 = arith.constant dense<0.000000e+00> : vector<128xf32>
    %24 = vector.multi_reduction <add>, %20, %cst_29 [0] : vector<32x128xf32> to vector<128xf32>
    %25 = vector.shape_cast %24 : vector<128xf32> to vector<1x128xf32>
    %26 = arith.mulf %20, %20 : vector<32x128xf32>
    %cst_30 = arith.constant dense<0.000000e+00> : vector<128xf32>
    %27 = vector.multi_reduction <add>, %26, %cst_30 [0] : vector<32x128xf32> to vector<128xf32>
    %28 = vector.shape_cast %27 : vector<128xf32> to vector<1x128xf32>
    %29 = tpu.iota {dimensions = array<i32: 0>} : vector<8x128xi32>
    %c0_i32 = arith.constant 0 : i32
    %30 = vector.broadcast %c0_i32 : i32 to vector<8x128xi32>
    %31 = arith.cmpi eq, %29, %30 : vector<8x128xi32>
    %c1_i32 = arith.constant 1 : i32
    %32 = vector.broadcast %c1_i32 : i32 to vector<8x128xi32>
    %33 = arith.cmpi eq, %29, %32 : vector<8x128xi32>
    %cst_31 = arith.constant 0.000000e+00 : f32
    %34 = vector.shape_cast %28 : vector<1x128xf32> to vector<1x128xf32>
    %35 = vector.broadcast %34 : vector<1x128xf32> to vector<8x128xf32>
    %36 = vector.broadcast %cst_31 : f32 to vector<8x128xf32>
    %37 = arith.select %33, %35, %36 : vector<8x128xi1>, vector<8x128xf32>
    %38 = vector.shape_cast %25 : vector<1x128xf32> to vector<1x128xf32>
    %39 = vector.broadcast %38 : vector<1x128xf32> to vector<8x128xf32>
    %40 = arith.select %31, %39, %37 : vector<8x128xi1>, vector<8x128xf32>
    %c0_32 = arith.constant 0 : index
    %c0_33 = arith.constant 0 : index
    %c0_34 = arith.constant 0 : index
    %41 = vector.load %arg4[%c0_32, %c0_33, %c0_34] : memref<1x8x128xf32, #tpu.memory_space<vmem>>, vector<1x8x128xf32>
    %42 = vector.shape_cast %41 : vector<1x8x128xf32> to vector<8x128xf32>
    %43 = vector.shape_cast %40 : vector<8x128xf32> to vector<1x8x128xf32>
    tpu.vector_store %arg4[%c0_32, %c0_33, %c0_34], %43 {strides = array<i32>} : memref<1x8x128xf32, #tpu.memory_space<vmem>>, vector<1x8x128xf32>,
    return
  }
  func.func @transform_0(%arg0: i32) -> (i32, i32, i32) {
    %c0_i32 = arith.constant 0 : i32
    %c0_i32_0 = arith.constant 0 : i32
    %c0_i32_1 = arith.constant 0 : i32
    return %arg0, %c0_i32, %c0_i32_0 : i32, i32, i32
  }
  func.func @transform_1(%arg0: i32) -> (i32, i32, i32) {
    %c0_i32 = arith.constant 0 : i32
    %c0_i32_0 = arith.constant 0 : i32
    %c0_i32_1 = arith.constant 0 : i32
    %c0_i32_2 = arith.constant 0 : i32
    return %c0_i32, %c0_i32_0, %c0_i32_1 : i32, i32, i32
  }
  func.func @transform_2(%arg0: i32) -> (i32, i32, i32) {
    %c0_i32 = arith.constant 0 : i32
    %c0_i32_0 = arith.constant 0 : i32
    %c0_i32_1 = arith.constant 0 : i32
    return %arg0, %c0_i32, %c0_i32_0 : i32, i32, i32
  }
  func.func @transform_3(%arg0: i32) -> (i32, i32, i32) {
    %c0_i32 = arith.constant 0 : i32
    %c0_i32_0 = arith.constant 0 : i32
    %c0_i32_1 = arith.constant 0 : i32
    return %arg0, %c0_i32, %c0_i32_0 : i32, i32, i32
  }
}

module attributes {stable_mosaic.version = 11 : i64} {
  func.func @_pass_b_kernel(%arg0: i32, %arg1: memref<2x16x128xbf16, #tpu.memory_space<vmem>>, %arg2: memref<3x128x128xbf16, #tpu.memory_space<vmem>>, %arg3: memref<1x128xf32, #tpu.memory_space<vmem>>, %arg4: memref<1x128xf32, #tpu.memory_space<vmem>>, %arg5: memref<2x16x128xbf16, #tpu.memory_space<vmem>>, %arg6: memref<1x8x128xf32, #tpu.memory_space<vmem>>, %arg7: memref<2x18x128xbf16, #tpu.memory_space<vmem>>) attributes {dimension_semantics = [#tpu.dimension_semantics<parallel>], iteration_bounds = array<i64: 1>, scalar_prefetch = 0 : i64, scratch_operands = 1 : i64, tpu.core_type = #tpu.core_type<tc>, window_params = [{transform_indices = @transform_0, window_bounds = array<i64: 2, 16, 128>}, {pipeline_mode = #tpu.pipeline_mode<synchronous>, transform_indices = @transform_1, window_bounds = array<i64: 3, 128, 128>}, {pipeline_mode = #tpu.pipeline_mode<synchronous>, transform_indices = @transform_2, window_bounds = array<i64: 1, 128>}, {pipeline_mode = #tpu.pipeline_mode<synchronous>, transform_indices = @transform_3, window_bounds = array<i64: 1, 128>}, {transform_indices = @transform_4, window_bounds = array<i64: 2, 16, 128>}, {transform_indices = @transform_5, window_bounds = array<i64: 1, 8, 128>}]} {
    %c0 = arith.constant 0 : index
    %c0_0 = arith.constant 0 : index
    %c0_1 = arith.constant 0 : index
    %0 = vector.load %arg1[%c0, %c0_0, %c0_1] : memref<2x16x128xbf16, #tpu.memory_space<vmem>>, vector<2x16x128xbf16>
    %1 = arith.extf %0 : vector<2x16x128xbf16> to vector<2x16x128xf32>
    %c0_2 = arith.constant 0 : index
    %c0_3 = arith.constant 0 : index
    %2 = vector.load %arg3[%c0_2, %c0_3] : memref<1x128xf32, #tpu.memory_space<vmem>>, vector<1x128xf32>
    %3 = vector.shape_cast %2 : vector<1x128xf32> to vector<1x1x128xf32>
    %4 = vector.broadcast %3 : vector<1x1x128xf32> to vector<2x16x128xf32>
    %5 = arith.mulf %1, %4 : vector<2x16x128xf32>
    %c0_4 = arith.constant 0 : index
    %c0_5 = arith.constant 0 : index
    %6 = vector.load %arg4[%c0_4, %c0_5] : memref<1x128xf32, #tpu.memory_space<vmem>>, vector<1x128xf32>
    %7 = vector.shape_cast %6 : vector<1x128xf32> to vector<1x1x128xf32>
    %8 = vector.broadcast %7 : vector<1x1x128xf32> to vector<2x16x128xf32>
    %9 = arith.addf %5, %8 : vector<2x16x128xf32>
    %cst = arith.constant 0.000000e+00 : f32
    %10 = vector.broadcast %cst : f32 to vector<2x16x128xf32>
    %11 = arith.maximumf %9, %10 : vector<2x16x128xf32>
    %12 = arith.truncf %11 : vector<2x16x128xf32> to vector<2x16x128xbf16>
    %cst_6 = arith.constant 0.000000e+00 : bf16
    %13 = vector.broadcast %cst_6 : bf16 to vector<2x1x128xbf16>
    %c0_7 = arith.constant 0 : index
    %c0_8 = arith.constant 0 : index
    %c0_9 = arith.constant 0 : index
    %14 = vector.load %arg7[%c0_7, %c0_8, %c0_9] : memref<2x18x128xbf16, #tpu.memory_space<vmem>>, vector<2x1x128xbf16>
    tpu.vector_store %arg7[%c0_7, %c0_8, %c0_9], %13 {strides = array<i32>} : memref<2x18x128xbf16, #tpu.memory_space<vmem>>, vector<2x1x128xbf16>,
    %c0_10 = arith.constant 0 : index
    %c17 = arith.constant 17 : index
    %c0_11 = arith.constant 0 : index
    %15 = vector.load %arg7[%c0_10, %c17, %c0_11] : memref<2x18x128xbf16, #tpu.memory_space<vmem>>, vector<2x1x128xbf16>
    tpu.vector_store %arg7[%c0_10, %c17, %c0_11], %13 {strides = array<i32>} : memref<2x18x128xbf16, #tpu.memory_space<vmem>>, vector<2x1x128xbf16>,
    %c0_12 = arith.constant 0 : index
    %c1 = arith.constant 1 : index
    %c0_13 = arith.constant 0 : index
    %16 = vector.load %arg7[%c0_12, %c1, %c0_13] : memref<2x18x128xbf16, #tpu.memory_space<vmem>>, vector<2x16x128xbf16>
    tpu.vector_store %arg7[%c0_12, %c1, %c0_13], %12 {strides = array<i32>} : memref<2x18x128xbf16, #tpu.memory_space<vmem>>, vector<2x16x128xbf16>,
    %c0_14 = arith.constant 0 : index
    %c2 = arith.constant 2 : index
    %c0_15 = arith.constant 0 : index
    %17 = vector.load %arg7[%c0_14, %c2, %c0_15] : memref<2x18x128xbf16, #tpu.memory_space<vmem>>, vector<2x16x128xbf16>
    %18 = vector.shape_cast %17 : vector<2x16x128xbf16> to vector<32x128xbf16>
    %c0_16 = arith.constant 0 : index
    %c0_17 = arith.constant 0 : index
    %c0_18 = arith.constant 0 : index
    %19 = vector.load %arg7[%c0_16, %c0_17, %c0_18] : memref<2x18x128xbf16, #tpu.memory_space<vmem>>, vector<2x16x128xbf16>
    %20 = vector.shape_cast %19 : vector<2x16x128xbf16> to vector<32x128xbf16>
    %21 = vector.shape_cast %12 : vector<2x16x128xbf16> to vector<32x128xbf16>
    %c0_19 = arith.constant 0 : index
    %c0_20 = arith.constant 0 : index
    %c0_21 = arith.constant 0 : index
    %22 = vector.load %arg2[%c0_19, %c0_20, %c0_21] : memref<3x128x128xbf16, #tpu.memory_space<vmem>>, vector<1x128x128xbf16>
    %23 = vector.shape_cast %22 : vector<1x128x128xbf16> to vector<128x128xbf16>
    %cst_22 = arith.constant dense<0.000000e+00> : vector<32x128xf32>
    %24 = tpu.matmul %18, %23, %cst_22 {dimension_numbers = #tpu.dot_dimension_numbers<[1], [0], [0], [1], [0, 0, 1, 1], [], []>} : vector<32x128xbf16>, vector<128x128xbf16>, vector<32x128xf32> -> vector<32x128xf32>
    %c1_23 = arith.constant 1 : index
    %c0_24 = arith.constant 0 : index
    %c0_25 = arith.constant 0 : index
    %25 = vector.load %arg2[%c1_23, %c0_24, %c0_25] : memref<3x128x128xbf16, #tpu.memory_space<vmem>>, vector<1x128x128xbf16>
    %26 = vector.shape_cast %25 : vector<1x128x128xbf16> to vector<128x128xbf16>
    %cst_26 = arith.constant dense<0.000000e+00> : vector<32x128xf32>
    %27 = tpu.matmul %21, %26, %cst_26 {dimension_numbers = #tpu.dot_dimension_numbers<[1], [0], [0], [1], [0, 0, 1, 1], [], []>} : vector<32x128xbf16>, vector<128x128xbf16>, vector<32x128xf32> -> vector<32x128xf32>
    %28 = arith.addf %24, %27 : vector<32x128xf32>
    %c2_27 = arith.constant 2 : index
    %c0_28 = arith.constant 0 : index
    %c0_29 = arith.constant 0 : index
    %29 = vector.load %arg2[%c2_27, %c0_28, %c0_29] : memref<3x128x128xbf16, #tpu.memory_space<vmem>>, vector<1x128x128xbf16>
    %30 = vector.shape_cast %29 : vector<1x128x128xbf16> to vector<128x128xbf16>
    %cst_30 = arith.constant dense<0.000000e+00> : vector<32x128xf32>
    %31 = tpu.matmul %20, %30, %cst_30 {dimension_numbers = #tpu.dot_dimension_numbers<[1], [0], [0], [1], [0, 0, 1, 1], [], []>} : vector<32x128xbf16>, vector<128x128xbf16>, vector<32x128xf32> -> vector<32x128xf32>
    %32 = arith.addf %28, %31 : vector<32x128xf32>
    %33 = vector.shape_cast %32 : vector<32x128xf32> to vector<2x16x128xf32>
    %34 = arith.truncf %33 : vector<2x16x128xf32> to vector<2x16x128xbf16>
    %c0_31 = arith.constant 0 : index
    %c0_32 = arith.constant 0 : index
    %c0_33 = arith.constant 0 : index
    %35 = vector.load %arg5[%c0_31, %c0_32, %c0_33] : memref<2x16x128xbf16, #tpu.memory_space<vmem>>, vector<2x16x128xbf16>
    tpu.vector_store %arg5[%c0_31, %c0_32, %c0_33], %34 {strides = array<i32>} : memref<2x16x128xbf16, #tpu.memory_space<vmem>>, vector<2x16x128xbf16>,
    %cst_34 = arith.constant dense<0.000000e+00> : vector<128xf32>
    %36 = vector.multi_reduction <add>, %32, %cst_34 [0] : vector<32x128xf32> to vector<128xf32>
    %37 = vector.shape_cast %36 : vector<128xf32> to vector<1x128xf32>
    %38 = arith.mulf %32, %32 : vector<32x128xf32>
    %cst_35 = arith.constant dense<0.000000e+00> : vector<128xf32>
    %39 = vector.multi_reduction <add>, %38, %cst_35 [0] : vector<32x128xf32> to vector<128xf32>
    %40 = vector.shape_cast %39 : vector<128xf32> to vector<1x128xf32>
    %41 = tpu.iota {dimensions = array<i32: 0>} : vector<8x128xi32>
    %c0_i32 = arith.constant 0 : i32
    %42 = vector.broadcast %c0_i32 : i32 to vector<8x128xi32>
    %43 = arith.cmpi eq, %41, %42 : vector<8x128xi32>
    %c1_i32 = arith.constant 1 : i32
    %44 = vector.broadcast %c1_i32 : i32 to vector<8x128xi32>
    %45 = arith.cmpi eq, %41, %44 : vector<8x128xi32>
    %cst_36 = arith.constant 0.000000e+00 : f32
    %46 = vector.shape_cast %40 : vector<1x128xf32> to vector<1x128xf32>
    %47 = vector.broadcast %46 : vector<1x128xf32> to vector<8x128xf32>
    %48 = vector.broadcast %cst_36 : f32 to vector<8x128xf32>
    %49 = arith.select %45, %47, %48 : vector<8x128xi1>, vector<8x128xf32>
    %50 = vector.shape_cast %37 : vector<1x128xf32> to vector<1x128xf32>
    %51 = vector.broadcast %50 : vector<1x128xf32> to vector<8x128xf32>
    %52 = arith.select %43, %51, %49 : vector<8x128xi1>, vector<8x128xf32>
    %c0_37 = arith.constant 0 : index
    %c0_38 = arith.constant 0 : index
    %c0_39 = arith.constant 0 : index
    %53 = vector.load %arg6[%c0_37, %c0_38, %c0_39] : memref<1x8x128xf32, #tpu.memory_space<vmem>>, vector<1x8x128xf32>
    %54 = vector.shape_cast %53 : vector<1x8x128xf32> to vector<8x128xf32>
    %55 = vector.shape_cast %52 : vector<8x128xf32> to vector<1x8x128xf32>
    tpu.vector_store %arg6[%c0_37, %c0_38, %c0_39], %55 {strides = array<i32>} : memref<1x8x128xf32, #tpu.memory_space<vmem>>, vector<1x8x128xf32>,
    return
  }
  func.func @transform_0(%arg0: i32) -> (i32, i32, i32) {
    %c0_i32 = arith.constant 0 : i32
    %c0_i32_0 = arith.constant 0 : i32
    %c0_i32_1 = arith.constant 0 : i32
    return %arg0, %c0_i32, %c0_i32_0 : i32, i32, i32
  }
  func.func @transform_1(%arg0: i32) -> (i32, i32, i32) {
    %c0_i32 = arith.constant 0 : i32
    %c0_i32_0 = arith.constant 0 : i32
    %c0_i32_1 = arith.constant 0 : i32
    %c0_i32_2 = arith.constant 0 : i32
    return %c0_i32, %c0_i32_0, %c0_i32_1 : i32, i32, i32
  }
  func.func @transform_2(%arg0: i32) -> (i32, i32) {
    %c0_i32 = arith.constant 0 : i32
    %c0_i32_0 = arith.constant 0 : i32
    %c0_i32_1 = arith.constant 0 : i32
    return %c0_i32, %c0_i32_0 : i32, i32
  }
  func.func @transform_3(%arg0: i32) -> (i32, i32) {
    %c0_i32 = arith.constant 0 : i32
    %c0_i32_0 = arith.constant 0 : i32
    %c0_i32_1 = arith.constant 0 : i32
    return %c0_i32, %c0_i32_0 : i32, i32
  }
  func.func @transform_4(%arg0: i32) -> (i32, i32, i32) {
    %c0_i32 = arith.constant 0 : i32
    %c0_i32_0 = arith.constant 0 : i32
    %c0_i32_1 = arith.constant 0 : i32
    return %arg0, %c0_i32, %c0_i32_0 : i32, i32, i32
  }
  func.func @transform_5(%arg0: i32) -> (i32, i32, i32) {
    %c0_i32 = arith.constant 0 : i32
    %c0_i32_0 = arith.constant 0 : i32
    %c0_i32_1 = arith.constant 0 : i32
    return %arg0, %c0_i32, %c0_i32_0 : i32, i32, i32
  }
}

module attributes {stable_mosaic.version = 11 : i64} {
  func.func @_pass_c_kernel(%arg0: i32, %arg1: memref<2x16x128xbf16, #tpu.memory_space<vmem>>, %arg2: memref<2x16x128xbf16, #tpu.memory_space<vmem>>, %arg3: memref<1x128xf32, #tpu.memory_space<vmem>>, %arg4: memref<1x128xf32, #tpu.memory_space<vmem>>, %arg5: memref<2x16x128xf32, #tpu.memory_space<vmem>>) attributes {dimension_semantics = [#tpu.dimension_semantics<parallel>], iteration_bounds = array<i64: 1>, scalar_prefetch = 0 : i64, scratch_operands = 0 : i64, tpu.core_type = #tpu.core_type<tc>, window_params = [{transform_indices = @transform_0, window_bounds = array<i64: 2, 16, 128>}, {transform_indices = @transform_1, window_bounds = array<i64: 2, 16, 128>}, {pipeline_mode = #tpu.pipeline_mode<synchronous>, transform_indices = @transform_2, window_bounds = array<i64: 1, 128>}, {pipeline_mode = #tpu.pipeline_mode<synchronous>, transform_indices = @transform_3, window_bounds = array<i64: 1, 128>}, {transform_indices = @transform_4, window_bounds = array<i64: 2, 16, 128>}]} {
    %c0 = arith.constant 0 : index
    %c0_0 = arith.constant 0 : index
    %c0_1 = arith.constant 0 : index
    %0 = vector.load %arg1[%c0, %c0_0, %c0_1] : memref<2x16x128xbf16, #tpu.memory_space<vmem>>, vector<2x16x128xbf16>
    %1 = arith.extf %0 : vector<2x16x128xbf16> to vector<2x16x128xf32>
    %c0_2 = arith.constant 0 : index
    %c0_3 = arith.constant 0 : index
    %2 = vector.load %arg3[%c0_2, %c0_3] : memref<1x128xf32, #tpu.memory_space<vmem>>, vector<1x128xf32>
    %3 = vector.shape_cast %2 : vector<1x128xf32> to vector<1x1x128xf32>
    %4 = vector.broadcast %3 : vector<1x1x128xf32> to vector<2x16x128xf32>
    %5 = arith.mulf %1, %4 : vector<2x16x128xf32>
    %c0_4 = arith.constant 0 : index
    %c0_5 = arith.constant 0 : index
    %6 = vector.load %arg4[%c0_4, %c0_5] : memref<1x128xf32, #tpu.memory_space<vmem>>, vector<1x128xf32>
    %7 = vector.shape_cast %6 : vector<1x128xf32> to vector<1x1x128xf32>
    %8 = vector.broadcast %7 : vector<1x1x128xf32> to vector<2x16x128xf32>
    %9 = arith.addf %5, %8 : vector<2x16x128xf32>
    %c0_6 = arith.constant 0 : index
    %c0_7 = arith.constant 0 : index
    %c0_8 = arith.constant 0 : index
    %10 = vector.load %arg2[%c0_6, %c0_7, %c0_8] : memref<2x16x128xbf16, #tpu.memory_space<vmem>>, vector<2x16x128xbf16>
    %11 = arith.extf %10 : vector<2x16x128xbf16> to vector<2x16x128xf32>
    %12 = arith.addf %9, %11 : vector<2x16x128xf32>
    %cst = arith.constant 0.000000e+00 : f32
    %13 = vector.broadcast %cst : f32 to vector<2x16x128xf32>
    %14 = arith.maximumf %12, %13 : vector<2x16x128xf32>
    %c0_9 = arith.constant 0 : index
    %c0_10 = arith.constant 0 : index
    %c0_11 = arith.constant 0 : index
    %15 = vector.load %arg5[%c0_9, %c0_10, %c0_11] : memref<2x16x128xf32, #tpu.memory_space<vmem>>, vector<2x16x128xf32>
    tpu.vector_store %arg5[%c0_9, %c0_10, %c0_11], %14 {strides = array<i32>} : memref<2x16x128xf32, #tpu.memory_space<vmem>>, vector<2x16x128xf32>,
    return
  }
  func.func @transform_0(%arg0: i32) -> (i32, i32, i32) {
    %c0_i32 = arith.constant 0 : i32
    %c0_i32_0 = arith.constant 0 : i32
    %c0_i32_1 = arith.constant 0 : i32
    return %arg0, %c0_i32, %c0_i32_0 : i32, i32, i32
  }
  func.func @transform_1(%arg0: i32) -> (i32, i32, i32) {
    %c0_i32 = arith.constant 0 : i32
    %c0_i32_0 = arith.constant 0 : i32
    %c0_i32_1 = arith.constant 0 : i32
    return %arg0, %c0_i32, %c0_i32_0 : i32, i32, i32
  }
  func.func @transform_2(%arg0: i32) -> (i32, i32) {
    %c0_i32 = arith.constant 0 : i32
    %c0_i32_0 = arith.constant 0 : i32
    %c0_i32_1 = arith.constant 0 : i32
    return %c0_i32, %c0_i32_0 : i32, i32
  }
  func.func @transform_3(%arg0: i32) -> (i32, i32) {
    %c0_i32 = arith.constant 0 : i32
    %c0_i32_0 = arith.constant 0 : i32
    %c0_i32_1 = arith.constant 0 : i32
    return %c0_i32, %c0_i32_0 : i32, i32
  }
  func.func @transform_4(%arg0: i32) -> (i32, i32, i32) {
    %c0_i32 = arith.constant 0 : i32
    %c0_i32_0 = arith.constant 0 : i32
    %c0_i32_1 = arith.constant 0 : i32
    return %arg0, %c0_i32, %c0_i32_0 : i32, i32, i32
  }
}

</mosaic_0001>

<llo_original>
// kernel: basic_block_dec.5
$region0: #{basic_block_dec.5}
  #allocation0 [shape = 'u32[]', space=smem, size = 0x4, offset = 0x4, fixed_abs, tag = 'smem constant byte address 0x4 - core index']
  #allocation1 [shape = 'u32[144,128]{1,0:T(1,128)}', space=vmem, size = 0x12000, scoped, tag = 'internal scratch']
  %s0 = inlined_call_operand.vmem [shape: bf16[2,16,128], index: 0, kind: input, shape index: {}]
  %s1 = inlined_call_operand.vmem [shape: bf16[2,16,128], index: 1, kind: input, shape index: {}]
  %s2 = inlined_call_operand.vmem [shape: f32[1,128], index: 2, kind: input, shape index: {}]
  %s3 = inlined_call_operand.vmem [shape: f32[1,128], index: 3, kind: input, shape index: {}]
  %s4 = inlined_call_operand.vmem [shape: f32[2,16,128], index: 4, kind: output, shape index: {}]
  %s5 = sld [smem:[#allocation0]]
  $region26: #{basic_block_dec.5} parent=0
    _
  %s7 = ssub.s32 1, %s5
  %s8 = scalar_select 0, %s7, %s5
  // Predicated region
  $region2: #{basic_block_dec.5} parent=0 // pred_check
    _
  $region3: #{basic_block_dec.5} parent=0 // pred_check_branch
    %10 = sbr.rel (0) target = $region5
  $region4: #{basic_block_dec.5} parent=0 // pred_region
    _
  $region5: #{basic_block_dec.5} parent=0 // pred_fallthru
    _
  // Predicated region
  $region6: #{basic_block_dec.5} parent=0 // pred_check
    _
  $region7: #{basic_block_dec.5} parent=0 // pred_check_branch
    %12 = sbr.rel (0) target = $region9
  $region8: #{basic_block_dec.5} parent=0 // pred_region
    _
  $region9: #{basic_block_dec.5} parent=0 // pred_fallthru
    _
  // Predicated region
  $region10: #{basic_block_dec.5} parent=0 // pred_check
    _
  $region11: #{basic_block_dec.5} parent=0 // pred_check_branch
    %14 = sbr.rel (0) target = $region13
  $region12: #{basic_block_dec.5} parent=0 // pred_region
    _
  $region13: #{basic_block_dec.5} parent=0 // pred_fallthru
    _
  // Predicated region
  $region14: #{basic_block_dec.5} parent=0 // pred_check
    _
  $region15: #{basic_block_dec.5} parent=0 // pred_check_branch
    %16 = sbr.rel (0) target = $region17
  $region16: #{basic_block_dec.5} parent=0 // pred_region
    _
  $region17: #{basic_block_dec.5} parent=0 // pred_fallthru
    _
  %v17 = vld [vmem:[%s0] sm:$0xf]
  %v18 = vld [vmem:[%s0 + $0x4] sm:$0xf]
  %v19 = vld [vmem:[%s0 + $0x8] sm:$0xf]
  %v20 = vld [vmem:[%s0 + $0xc] sm:$0xf]
  %v21 = vunpack.c.l.bf16 %v17
  %v22 = vunpack.c.l.bf16 %v18
  %v23 = vunpack.c.l.bf16 %v19
  %v24 = vunpack.c.l.bf16 %v20
  %v25 = vld [vmem:[%s2] sm:$0x1]
  %v27 = vlaneseq
  %v28 = vshrl.u32 %v27, 7
  %v29 = vsub.s32 0, %v28
  %v30 = vrot.slane %v25, %v29
  %v32 = vmul.f32 %v21, %v30
  %v33 = vmul.f32 %v22, %v30
  %v34 = vmul.f32 %v23, %v30
  %v35 = vmul.f32 %v24, %v30
  %v36 = vld [vmem:[%s3] sm:$0x1]
  %v38 = vlaneseq
  %v39 = vshrl.u32 %v38, 7
  %v40 = vsub.s32 0, %v39
  %v41 = vrot.slane %v36, %v40
  %v43 = vadd.f32 %v32, %v41
  %v44 = vadd.f32 %v33, %v41
  %v45 = vadd.f32 %v34, %v41
  %v46 = vadd.f32 %v35, %v41
  %v47 = vld [vmem:[%s1] sm:$0xf]
  %v48 = vld [vmem:[%s1 + $0x4] sm:$0xf]
  %v49 = vld [vmem:[%s1 + $0x8] sm:$0xf]
  %v50 = vld [vmem:[%s1 + $0xc] sm:$0xf]
  %v51 = vunpack.c.l.bf16 %v47
  %v52 = vunpack.c.l.bf16 %v48
  %v53 = vunpack.c.l.bf16 %v49
  %v54 = vunpack.c.l.bf16 %v50
  %v55 = vadd.f32 %v43, %v51
  %v56 = vadd.f32 %v44, %v52
  %v57 = vadd.f32 %v45, %v53
  %v58 = vadd.f32 %v46, %v54
  %v59 = vmax.f32 %v55, 0.0
  %v60 = vmax.f32 %v56, 0.0
  %v61 = vmax.f32 %v57, 0.0
  %v62 = vmax.f32 %v58, 0.0
  %63 = vst [vmem:[%s4] sm:$0xff] %v59
  %64 = vst [vmem:[%s4 + $0x8] sm:$0xff] %v60
  %65 = vst [vmem:[%s4 + $0x10] sm:$0xff] %v61
  %66 = vst [vmem:[%s4 + $0x18] sm:$0xff] %v62
  // Predicated region
  $region18: #{basic_block_dec.5} parent=0 // pred_check
    _
  $region19: #{basic_block_dec.5} parent=0 // pred_check_branch
    %68 = sbr.rel (0) target = $region21
  $region20: #{basic_block_dec.5} parent=0 // pred_region
    _
  $region21: #{basic_block_dec.5} parent=0 // pred_fallthru
    _
  // Predicated region
  $region22: #{basic_block_dec.5} parent=0 // pred_check
    _
  $region23: #{basic_block_dec.5} parent=0 // pred_check_branch
    %70 = sbr.rel (0) target = $region25
  $region24: #{basic_block_dec.5} parent=0 // pred_region
    _
  $region25: #{basic_block_dec.5} parent=0 // pred_fallthru
    _

// kernel: basic_block_dec.3
$region0: #{basic_block_dec.3}
  #allocation0 [shape = 'u32[]', space=smem, size = 0x4, offset = 0x4, fixed_abs, tag = 'smem constant byte address 0x4 - core index']
  #allocation1 [shape = 'u32[144,128]{1,0:T(1,128)}', space=vmem, size = 0x12000, scoped, tag = 'internal scratch']
  #allocation2 [shape = 'bf16[2,18,128]{2,1,0:T(8,128)(2,1)}', space=vmem, size = 0x3000, scoped, tag = 'scratch operand']
  %s0 = inlined_call_operand.vmem [shape: bf16[2,16,128], index: 0, kind: input, shape index: {}]
  %s1 = inlined_call_operand.vmem [shape: bf16[3,128,128], index: 1, kind: input, shape index: {}]
  %s2 = inlined_call_operand.vmem [shape: bf16[2,16,128], index: 2, kind: output, shape index: {0}]
  %s3 = inlined_call_operand.vmem [shape: f32[1,8,128], index: 3, kind: output, shape index: {1}]
  %4 = xla_tuple %s2, %s3
  %s5 = sld [smem:[#allocation0]]
  $region26: #{basic_block_dec.3} parent=0
    _
  %s7 = ssub.s32 1, %s5
  %s8 = scalar_select 0, %s7, %s5
  // Predicated region
  $region2: #{basic_block_dec.3} parent=0 // pred_check
    _
  $region3: #{basic_block_dec.3} parent=0 // pred_check_branch
    %10 = sbr.rel (0) target = $region5
  $region4: #{basic_block_dec.3} parent=0 // pred_region
    _
  $region5: #{basic_block_dec.3} parent=0 // pred_fallthru
    _
  // Predicated region
  $region6: #{basic_block_dec.3} parent=0 // pred_check
    _
  $region7: #{basic_block_dec.3} parent=0 // pred_check_branch
    %12 = sbr.rel (0) target = $region9
  $region8: #{basic_block_dec.3} parent=0 // pred_region
    _
  $region9: #{basic_block_dec.3} parent=0 // pred_fallthru
    _
  %v14 = vld [vmem:[%s0] sm:$0xf]
  %v15 = vld [vmem:[%s0 + $0x4] sm:$0xf]
  %v16 = vld [vmem:[%s0 + $0x8] sm:$0xf]
  %v17 = vld [vmem:[%s0 + $0xc] sm:$0xf]
  %vm18 = vcmask 1040384
  %vm19 = vsmask.f32 256
  %vm20 = vmand %vm18, %vm19
  %v21 = vld [vmem:[#allocation2] sm:$0x1]
  %v22 = vsel %vm20, 0, %v21
  %23 = vst [vmem:[#allocation2] sm:$0x1] %v22
  %v24 = vld [vmem:[#allocation2 + $0xc] sm:$0x1]
  %v25 = vsel %vm20, 0, %v24
  %26 = vst [vmem:[#allocation2 + $0xc] sm:$0x1] %v25
  %vm27 = vsmask.f32 7938
  %vm28 = vmand %vm18, %vm27
  %v29 = vld [vmem:[#allocation2 + $0x8] sm:$0x1]
  %v30 = vsel %vm28, 0, %v29
  %31 = vst [vmem:[#allocation2 + $0x8] sm:$0x1] %v30
  %v32 = vld [vmem:[#allocation2 + $0x14] sm:$0x1]
  %v33 = vsel %vm28, 0, %v32
  %34 = vst [vmem:[#allocation2 + $0x14] sm:$0x1] %v33
  %vm35 = vsmask.f32 4368
  %vm36 = vmor %vm19, %vm35
  %v38 = vshrl.u32 %v14, 16
  %v40 = vrot.slane %v38, 7
  %v41 = vshll.u32 %v14, 16
  %v43 = vor.u32 %v40, %v41
  %v44 = vrot.slane %v40, 4
  %v46 = vshrl.u32 %v15, 16
  %v48 = vrot.slane %v46, 7
  %v49 = vshll.u32 %v15, 16
  %v51 = vor.u32 %v48, %v49
  %v52 = vsel %vm36, %v44, %v51
  %v53 = vrot.slane %v48, 4
  %v55 = vshrl.u32 %v16, 16
  %v57 = vrot.slane %v55, 7
  %v58 = vshll.u32 %v16, 16
  %v60 = vor.u32 %v57, %v58
  %v61 = vrot.slane %v57, 4
  %v63 = vshrl.u32 %v17, 16
  %v65 = vrot.slane %v63, 7
  %v66 = vshll.u32 %v17, 16
  %v68 = vor.u32 %v65, %v66
  %v69 = vsel %vm36, %v61, %v68
  %v70 = vrot.slane %v65, 4
  %vm77 = vcmask 1043456
  %vm78 = vmand %vm77, %vm27
  %v79 = vld [vmem:[#allocation2] sm:$0xf]
  %v80 = vsel %vm78, %v43, %v79
  %81 = vst [vmem:[#allocation2] sm:$0xf] %v80
  %82 = vst [vmem:[#allocation2 + $0x4] sm:$0xf] %v52
  %v83 = vld [vmem:[#allocation2 + $0x8] sm:$0x1]
  %v84 = vsel %vm20, %v53, %v83
  %85 = vst [vmem:[#allocation2 + $0x8] sm:$0x1] %v84
  %v86 = vld [vmem:[#allocation2 + $0xc] sm:$0xf]
  %v87 = vsel %vm78, %v60, %v86
  %88 = vst [vmem:[#allocation2 + $0xc] sm:$0xf] %v87
  %89 = vst [vmem:[#allocation2 + $0x10] sm:$0xf] %v69
  %v90 = vld [vmem:[#allocation2 + $0x14] sm:$0x1]
  %v91 = vsel %vm20, %v70, %v90
  %92 = vst [vmem:[#allocation2 + $0x14] sm:$0x1] %v91
  %v93 = vld [vmem:[#allocation2] sm:$0xe]
  %v94 = vld [vmem:[#allocation2 + $0x4] sm:$0xf]
  %v95 = vld [vmem:[#allocation2 + $0x8] sm:$0x1]
  %v96 = vld [vmem:[#allocation2 + $0xc] sm:$0xe]
  %v97 = vld [vmem:[#allocation2 + $0x10] sm:$0xf]
  %v98 = vld [vmem:[#allocation2 + $0x14] sm:$0x1]
  %vm105 = vcmask 1042432
  %vm106 = vcmask 1046532
  %vm107 = vmor %vm105, %vm106
  %v108 = vrot.slane %v93, 5
  %v109 = vrot.slane %v108, 4
  %v110 = vrot.slane %v94, 5
  %v111 = vsel %vm107, %v109, %v110
  %v112 = vrot.slane %v110, 4
  %v113 = vrot.slane %v95, 5
  %v114 = vsel %vm107, %v112, %v113
  %v115 = vrot.slane %v96, 5
  %v116 = vrot.slane %v115, 4
  %v117 = vrot.slane %v97, 5
  %v118 = vsel %vm107, %v116, %v117
  %v119 = vrot.slane %v117, 4
  %v120 = vrot.slane %v98, 5
  %v121 = vsel %vm107, %v119, %v120
  %v122 = vld [vmem:[#allocation2] sm:$0xf]
  %v123 = vld [vmem:[#allocation2 + $0xc] sm:$0xf]
  %v124 = vld [vmem:[%s1] sm:$0xf]
  %v125 = vld [vmem:[%s1 + $0x4] sm:$0xf]
  %v126 = vld [vmem:[%s1 + $0x8] sm:$0xf]
  %v127 = vld [vmem:[%s1 + $0xc] sm:$0xf]
  %v128 = vld [vmem:[%s1 + $0x10] sm:$0xf]
  %v129 = vld [vmem:[%s1 + $0x14] sm:$0xf]
  %v130 = vld [vmem:[%s1 + $0x18] sm:$0xf]
  %v131 = vld [vmem:[%s1 + $0x1c] sm:$0xf]
  %v132 = vld [vmem:[%s1 + $0x20] sm:$0xf]
  %v133 = vld [vmem:[%s1 + $0x24] sm:$0xf]
  %v134 = vld [vmem:[%s1 + $0x28] sm:$0xf]
  %v135 = vld [vmem:[%s1 + $0x2c] sm:$0xf]
  %v136 = vld [vmem:[%s1 + $0x30] sm:$0xf]
  %v137 = vld [vmem:[%s1 + $0x34] sm:$0xf]
  %v138 = vld [vmem:[%s1 + $0x38] sm:$0xf]
  %v139 = vld [vmem:[%s1 + $0x3c] sm:$0xf]
  %s140 = scalar_lea.vmem %s1, 64
  %v141 = vld [vmem:[%s140] sm:$0xf]
  %v142 = vld [vmem:[%s140 + $0x4] sm:$0xf]
  %v143 = vld [vmem:[%s140 + $0x8] sm:$0xf]
  %v144 = vld [vmem:[%s140 + $0xc] sm:$0xf]
  %v145 = vld [vmem:[%s140 + $0x10] sm:$0xf]
  %v146 = vld [vmem:[%s140 + $0x14] sm:$0xf]
  %v147 = vld [vmem:[%s140 + $0x18] sm:$0xf]
  %v148 = vld [vmem:[%s140 + $0x1c] sm:$0xf]
  %v149 = vld [vmem:[%s140 + $0x20] sm:$0xf]
  %v150 = vld [vmem:[%s140 + $0x24] sm:$0xf]
  %v151 = vld [vmem:[%s140 + $0x28] sm:$0xf]
  %v152 = vld [vmem:[%s140 + $0x2c] sm:$0xf]
  %v153 = vld [vmem:[%s140 + $0x30] sm:$0xf]
  %v154 = vld [vmem:[%s140 + $0x34] sm:$0xf]
  %v155 = vld [vmem:[%s140 + $0x38] sm:$0xf]
  %v156 = vld [vmem:[%s140 + $0x3c] sm:$0xf]
  %v161 = vunpack.c.l.b16 %v14
  %v162 = vunpack.c.l.b16 %v15
  %v163 = vunpack.c.l.b16 %v16
  %v164 = vunpack.c.l.b16 %v17
  %v165 = vpack.c.b16 %v162, %v161
  %v166 = vpack.c.b16 %v164, %v163
  %v185 = vunpack.c.l.b16 %v141
  %v186 = vunpack.c.l.b16 %v142
  %v187 = vunpack.c.l.b16 %v143
  %v188 = vunpack.c.l.b16 %v144
  %v189 = vunpack.c.l.b16 %v145
  %v190 = vunpack.c.l.b16 %v146
  %v191 = vunpack.c.l.b16 %v147
  %v192 = vunpack.c.l.b16 %v148
  %v193 = vunpack.c.l.b16 %v149
  %v194 = vunpack.c.l.b16 %v150
  %v195 = vunpack.c.l.b16 %v151
  %v196 = vunpack.c.l.b16 %v152
  %v197 = vunpack.c.l.b16 %v153
  %v198 = vunpack.c.l.b16 %v154
  %v199 = vunpack.c.l.b16 %v155
  %v200 = vunpack.c.l.b16 %v156
  %v201 = vpack.c.b16 %v186, %v185
  %v202 = vpack.c.b16 %v188, %v187
  %v203 = vpack.c.b16 %v190, %v189
  %v204 = vpack.c.b16 %v192, %v191
  %v205 = vpack.c.b16 %v194, %v193
  %v206 = vpack.c.b16 %v196, %v195
  %v207 = vpack.c.b16 %v198, %v197
  %v208 = vpack.c.b16 %v200, %v199
  %217 = vmatprep.subr.bf16.mxu0 0
  %218 = vmatpush1.bf16.msra.mxu0 %v201
  %219 = vmatprep.subr.bf16.mxu0 0
  %220 = vmatpush1.bf16.msra.mxu0 %v202
  %221 = vmatprep.subr.bf16.mxu0 0
  %222 = vmatpush1.bf16.msra.mxu0 %v203
  %223 = vmatprep.subr.bf16.mxu0 0
  %224 = vmatpush1.bf16.msra.mxu0 %v204
  %225 = vmatprep.subr.bf16.mxu0 0
  %226 = vmatpush1.bf16.msra.mxu0 %v205
  %227 = vmatprep.subr.bf16.mxu0 0
  %228 = vmatpush1.bf16.msra.mxu0 %v206
  %229 = vmatprep.subr.bf16.mxu0 0
  %230 = vmatpush1.bf16.msra.mxu0 %v207
  %231 = vmatprep.subr.bf16.mxu0 0
  %232 = vmatpush1.bf16.msra.mxu0 %v208
  %233 = vmatprep.subr.bf16.mxu0 0
  %234 = vmatpush1.bf16.msra.mxu0 0
  %235 = vmatprep.subr.bf16.mxu0 0
  %236 = vmatpush1.bf16.msra.mxu0 0
  %237 = vmatprep.subr.bf16.mxu0 0
  %238 = vmatpush1.bf16.msra.mxu0 0
  %239 = vmatprep.subr.bf16.mxu0 0
  %240 = vmatpush1.bf16.msra.mxu0 0
  %241 = vmatprep.subr.bf16.mxu0 0
  %242 = vmatpush1.bf16.msra.mxu0 0
  %243 = vmatprep.subr.bf16.mxu0 0
  %244 = vmatpush1.bf16.msra.mxu0 0
  %245 = vmatprep.subr.bf16.mxu0 0
  %246 = vmatpush1.bf16.msra.mxu0 0
  %247 = vmatprep.subr.bf16.mxu0 0
  %248 = vmatpush1.bf16.msra.mxu0 0
  %249 = vmatprep.mubr.bf16.mxu0 0
  %250 = vmatmul.mubr.bf16.gmra.mrb[0].mxu0 %v165
  %v251 = vpop.f32.mrb[0].mxu0
  %v252 = vadd.f32 0.0, %v251
  %v253 = vpop.f32.mrb[0].mxu0
  %v254 = vpop.f32.mrb[0].mxu0
  %v255 = vadd.f32 0.0, %v254
  %v256 = vpop.f32.mrb[0].mxu0
  %257 = vmatprep.mubr.bf16.mxu0 0
  %258 = vmatmul.mubr.bf16.gmra.mrb[0].mxu0 %v166
  %v259 = vpop.f32.mrb[0].mxu0
  %v260 = vadd.f32 0.0, %v259
  %v261 = vpop.f32.mrb[0].mxu0
  %v262 = vpop.f32.mrb[0].mxu0
  %v263 = vadd.f32 0.0, %v262
  %v264 = vpop.f32.mrb[0].mxu0
  %265 = vdwg.mxu0
  %v266 = vunpack.c.l.b16 %v111
  %v267 = vunpack.c.l.b16 %v114
  %v268 = vunpack.c.l.b16 %v118
  %v269 = vunpack.c.l.b16 %v121
  %v270 = vpack.c.b16 %v267, %v266
  %v271 = vpack.c.b16 %v269, %v268
  %v290 = vunpack.c.l.b16 %v124
  %v291 = vunpack.c.l.b16 %v125
  %v292 = vunpack.c.l.b16 %v126
  %v293 = vunpack.c.l.b16 %v127
  %v294 = vunpack.c.l.b16 %v128
  %v295 = vunpack.c.l.b16 %v129
  %v296 = vunpack.c.l.b16 %v130
  %v297 = vunpack.c.l.b16 %v131
  %v298 = vunpack.c.l.b16 %v132
  %v299 = vunpack.c.l.b16 %v133
  %v300 = vunpack.c.l.b16 %v134
  %v301 = vunpack.c.l.b16 %v135
  %v302 = vunpack.c.l.b16 %v136
  %v303 = vunpack.c.l.b16 %v137
  %v304 = vunpack.c.l.b16 %v138
  %v305 = vunpack.c.l.b16 %v139
  %v306 = vpack.c.b16 %v291, %v290
  %v307 = vpack.c.b16 %v293, %v292
  %v308 = vpack.c.b16 %v295, %v294
  %v309 = vpack.c.b16 %v297, %v296
  %v310 = vpack.c.b16 %v299, %v298
  %v311 = vpack.c.b16 %v301, %v300
  %v312 = vpack.c.b16 %v303, %v302
  %v313 = vpack.c.b16 %v305, %v304
  %322 = vmatprep.subr.bf16.mxu0 0
  %323 = vmatpush1.bf16.msra.mxu0 %v306
  %324 = vmatprep.subr.bf16.mxu0 0
  %325 = vmatpush1.bf16.msra.mxu0 %v307
  %326 = vmatprep.subr.bf16.mxu0 0
  %327 = vmatpush1.bf16.msra.mxu0 %v308
  %328 = vmatprep.subr.bf16.mxu0 0
  %329 = vmatpush1.bf16.msra.mxu0 %v309
  %330 = vmatprep.subr.bf16.mxu0 0
  %331 = vmatpush1.bf16.msra.mxu0 %v310
  %332 = vmatprep.subr.bf16.mxu0 0
  %333 = vmatpush1.bf16.msra.mxu0 %v311
  %334 = vmatprep.subr.bf16.mxu0 0
  %335 = vmatpush1.bf16.msra.mxu0 %v312
  %336 = vmatprep.subr.bf16.mxu0 0
  %337 = vmatpush1.bf16.msra.mxu0 %v313
  %338 = vmatprep.subr.bf16.mxu0 0
  %339 = vmatpush1.bf16.msra.mxu0 0
  %340 = vmatprep.subr.bf16.mxu0 0
  %341 = vmatpush1.bf16.msra.mxu0 0
  %342 = vmatprep.subr.bf16.mxu0 0
  %343 = vmatpush1.bf16.msra.mxu0 0
  %344 = vmatprep.subr.bf16.mxu0 0
  %345 = vmatpush1.bf16.msra.mxu0 0
  %346 = vmatprep.subr.bf16.mxu0 0
  %347 = vmatpush1.bf16.msra.mxu0 0
  %348 = vmatprep.subr.bf16.mxu0 0
  %349 = vmatpush1.bf16.msra.mxu0 0
  %350 = vmatprep.subr.bf16.mxu0 0
  %351 = vmatpush1.bf16.msra.mxu0 0
  %352 = vmatprep.subr.bf16.mxu0 0
  %353 = vmatpush1.bf16.msra.mxu0 0
  %354 = vmatprep.mubr.bf16.mxu0 0
  %355 = vmatmul.mubr.bf16.gmra.mrb[0].mxu0 %v270
  %v356 = vpop.f32.mrb[0].mxu0
  %v357 = vadd.f32 %v252, %v356
  %v358 = vpop.f32.mrb[0].mxu0
  %v359 = vpop.f32.mrb[0].mxu0
  %v360 = vadd.f32 %v255, %v359
  %v361 = vpop.f32.mrb[0].mxu0
  %362 = vmatprep.mubr.bf16.mxu0 0
  %363 = vmatmul.mubr.bf16.gmra.mrb[0].mxu0 %v271
  %v364 = vpop.f32.mrb[0].mxu0
  %v365 = vadd.f32 %v260, %v364
  %v366 = vpop.f32.mrb[0].mxu0
  %v367 = vpop.f32.mrb[0].mxu0
  %v368 = vadd.f32 %v263, %v367
  %v369 = vpop.f32.mrb[0].mxu0
  %370 = vdwg.mxu0
  %s371 = scalar_lea.vmem %s1, 128
  %v372 = vld [vmem:[%s371] sm:$0xf]
  %v373 = vld [vmem:[%s371 + $0x4] sm:$0xf]
  %v374 = vld [vmem:[%s371 + $0x8] sm:$0xf]
  %v375 = vld [vmem:[%s371 + $0xc] sm:$0xf]
  %v376 = vld [vmem:[%s371 + $0x10] sm:$0xf]
  %v377 = vld [vmem:[%s371 + $0x14] sm:$0xf]
  %v378 = vld [vmem:[%s371 + $0x18] sm:$0xf]
  %v379 = vld [vmem:[%s371 + $0x1c] sm:$0xf]
  %v380 = vld [vmem:[%s371 + $0x20] sm:$0xf]
  %v381 = vld [vmem:[%s371 + $0x24] sm:$0xf]
  %v382 = vld [vmem:[%s371 + $0x28] sm:$0xf]
  %v383 = vld [vmem:[%s371 + $0x2c] sm:$0xf]
  %v384 = vld [vmem:[%s371 + $0x30] sm:$0xf]
  %v385 = vld [vmem:[%s371 + $0x34] sm:$0xf]
  %v386 = vld [vmem:[%s371 + $0x38] sm:$0xf]
  %v387 = vld [vmem:[%s371 + $0x3c] sm:$0xf]
  %v390 = vunpack.c.l.b16 %v122
  %v391 = vunpack.c.l.b16 %v94
  %v392 = vunpack.c.l.b16 %v123
  %v393 = vunpack.c.l.b16 %v97
  %v394 = vpack.c.b16 %v391, %v390
  %v395 = vpack.c.b16 %v393, %v392
  %v414 = vunpack.c.l.b16 %v372
  %v415 = vunpack.c.l.b16 %v373
  %v416 = vunpack.c.l.b16 %v374
  %v417 = vunpack.c.l.b16 %v375
  %v418 = vunpack.c.l.b16 %v376
  %v419 = vunpack.c.l.b16 %v377
  %v420 = vunpack.c.l.b16 %v378
  %v421 = vunpack.c.l.b16 %v379
  %v422 = vunpack.c.l.b16 %v380
  %v423 = vunpack.c.l.b16 %v381
  %v424 = vunpack.c.l.b16 %v382
  %v425 = vunpack.c.l.b16 %v383
  %v426 = vunpack.c.l.b16 %v384
  %v427 = vunpack.c.l.b16 %v385
  %v428 = vunpack.c.l.b16 %v386
  %v429 = vunpack.c.l.b16 %v387
  %v430 = vpack.c.b16 %v415, %v414
  %v431 = vpack.c.b16 %v417, %v416
  %v432 = vpack.c.b16 %v419, %v418
  %v433 = vpack.c.b16 %v421, %v420
  %v434 = vpack.c.b16 %v423, %v422
  %v435 = vpack.c.b16 %v425, %v424
  %v436 = vpack.c.b16 %v427, %v426
  %v437 = vpack.c.b16 %v429, %v428
  %446 = vmatprep.subr.bf16.mxu0 0
  %447 = vmatpush1.bf16.msra.mxu0 %v430
  %448 = vmatprep.subr.bf16.mxu0 0
  %449 = vmatpush1.bf16.msra.mxu0 %v431
  %450 = vmatprep.subr.bf16.mxu0 0
  %451 = vmatpush1.bf16.msra.mxu0 %v432
  %452 = vmatprep.subr.bf16.mxu0 0
  %453 = vmatpush1.bf16.msra.mxu0 %v433
  %454 = vmatprep.subr.bf16.mxu0 0
  %455 = vmatpush1.bf16.msra.mxu0 %v434
  %456 = vmatprep.subr.bf16.mxu0 0
  %457 = vmatpush1.bf16.msra.mxu0 %v435
  %458 = vmatprep.subr.bf16.mxu0 0
  %459 = vmatpush1.bf16.msra.mxu0 %v436
  %460 = vmatprep.subr.bf16.mxu0 0
  %461 = vmatpush1.bf16.msra.mxu0 %v437
  %462 = vmatprep.subr.bf16.mxu0 0
  %463 = vmatpush1.bf16.msra.mxu0 0
  %464 = vmatprep.subr.bf16.mxu0 0
  %465 = vmatpush1.bf16.msra.mxu0 0
  %466 = vmatprep.subr.bf16.mxu0 0
  %467 = vmatpush1.bf16.msra.mxu0 0
  %468 = vmatprep.subr.bf16.mxu0 0
  %469 = vmatpush1.bf16.msra.mxu0 0
  %470 = vmatprep.subr.bf16.mxu0 0
  %471 = vmatpush1.bf16.msra.mxu0 0
  %472 = vmatprep.subr.bf16.mxu0 0
  %473 = vmatpush1.bf16.msra.mxu0 0
  %474 = vmatprep.subr.bf16.mxu0 0
  %475 = vmatpush1.bf16.msra.mxu0 0
  %476 = vmatprep.subr.bf16.mxu0 0
  %477 = vmatpush1.bf16.msra.mxu0 0
  %478 = vmatprep.mubr.bf16.mxu0 0
  %479 = vmatmul.mubr.bf16.gmra.mrb[0].mxu0 %v394
  %v480 = vpop.f32.mrb[0].mxu0
  %v481 = vadd.f32 0.0, %v480
  %v482 = vpop.f32.mrb[0].mxu0
  %v483 = vpop.f32.mrb[0].mxu0
  %v484 = vadd.f32 0.0, %v483
  %v485 = vpop.f32.mrb[0].mxu0
  %486 = vmatprep.mubr.bf16.mxu0 0
  %487 = vmatmul.mubr.bf16.gmra.mrb[0].mxu0 %v395
  %v488 = vpop.f32.mrb[0].mxu0
  %v489 = vadd.f32 0.0, %v488
  %v490 = vpop.f32.mrb[0].mxu0
  %v491 = vpop.f32.mrb[0].mxu0
  %v492 = vadd.f32 0.0, %v491
  %v493 = vpop.f32.mrb[0].mxu0
  %494 = vdwg.mxu0
  %v495 = vadd.f32 %v357, %v481
  %v496 = vadd.f32 %v360, %v484
  %v497 = vadd.f32 %v365, %v489
  %v498 = vadd.f32 %v368, %v492
  %v499 = vpack.c.bf16 %v496, %v495
  %v500 = vpack.c.bf16 %v498, %v497
  %v503 = vunpack.c.l.b16 %v499
  %v504 = vunpack.c.h.b16 %v499
  %v505 = vunpack.c.l.b16 %v500
  %v506 = vunpack.c.h.b16 %v500
  %v507 = vpack.c.b16 %v503, %v503
  %v508 = vpack.c.b16 %v504, %v504
  %v509 = vpack.c.b16 %v505, %v505
  %v510 = vpack.c.b16 %v506, %v506
  %515 = vst [vmem:[%s2] sm:$0xf] %v507
  %516 = vst [vmem:[%s2 + $0x4] sm:$0xf] %v508
  %517 = vst [vmem:[%s2 + $0x8] sm:$0xf] %v509
  %518 = vst [vmem:[%s2 + $0xc] sm:$0xf] %v510
  %v519 = vadd.f32 %v495, %v496
  %v520 = vadd.f32 %v519, %v497
  %v521 = vadd.f32 %v520, %v498
  %v522 = vrot.slane %v521, 4
  %v523 = vadd.f32 %v521, %v522
  %v524 = vrot.slane %v523, 2
  %v525 = vadd.f32 %v523, %v524
  %v526 = vrot.slane %v525, 1
  %v527 = vadd.f32 %v525, %v526
  %v528 = vmul.f32 %v495, %v495
  %v529 = vmul.f32 %v496, %v496
  %v530 = vmul.f32 %v497, %v497
  %v531 = vmul.f32 %v498, %v498
  %v532 = vadd.f32 %v528, %v529
  %v533 = vadd.f32 %v532, %v530
  %v534 = vadd.f32 %v533, %v531
  %v535 = vrot.slane %v534, 4
  %v536 = vadd.f32 %v534, %v535
  %v537 = vrot.slane %v536, 2
  %v538 = vadd.f32 %v536, %v537
  %v539 = vrot.slane %v538, 1
  %v540 = vadd.f32 %v538, %v539
  %v541 = vlaneseq
  %v542 = vshrl.u32 %v541, 7
  %vm543 = vcmp.eq.s32.totalorder %v542, 0
  %vm544 = vcmp.eq.s32.totalorder %v542, 1
  %v545 = vsel %vm544, %v540, 0.0
  %v546 = vsel %vm543, %v527, %v545
  %547 = vst [vmem:[%s3] sm:$0xff] %v546
  // Predicated region
  $region10: #{basic_block_dec.3} parent=0 // pred_check
    _
  $region11: #{basic_block_dec.3} parent=0 // pred_check_branch
    %549 = sbr.rel (0) target = $region13
  $region12: #{basic_block_dec.3} parent=0 // pred_region
    _
  $region13: #{basic_block_dec.3} parent=0 // pred_fallthru
    _
  // Predicated region
  $region14: #{basic_block_dec.3} parent=0 // pred_check
    _
  $region15: #{basic_block_dec.3} parent=0 // pred_check_branch
    %551 = sbr.rel (0) target = $region17
  $region16: #{basic_block_dec.3} parent=0 // pred_region
    _
  $region17: #{basic_block_dec.3} parent=0 // pred_fallthru
    _
  // Predicated region
  $region18: #{basic_block_dec.3} parent=0 // pred_check
    _
  $region19: #{basic_block_dec.3} parent=0 // pred_check_branch
    %553 = sbr.rel (0) target = $region21
  $region20: #{basic_block_dec.3} parent=0 // pred_region
    _
  $region21: #{basic_block_dec.3} parent=0 // pred_fallthru
    _
  // Predicated region
  $region22: #{basic_block_dec.3} parent=0 // pred_check
    _
  $region23: #{basic_block_dec.3} parent=0 // pred_check_branch
    %555 = sbr.rel (0) target = $region25
  $region24: #{basic_block_dec.3} parent=0 // pred_region
    _
  $region25: #{basic_block_dec.3} parent=0 // pred_fallthru
    _

// kernel: basic_block_dec.4
$region0: #{basic_block_dec.4}
  #allocation0 [shape = 'u32[]', space=smem, size = 0x4, offset = 0x4, fixed_abs, tag = 'smem constant byte address 0x4 - core index']
  #allocation1 [shape = 'u32[144,128]{1,0:T(1,128)}', space=vmem, size = 0x12000, scoped, tag = 'internal scratch']
  #allocation2 [shape = 'bf16[2,18,128]{2,1,0:T(8,128)(2,1)}', space=vmem, size = 0x3000, scoped, tag = 'scratch operand']
  %s0 = inlined_call_operand.vmem [shape: bf16[2,16,128], index: 0, kind: input, shape index: {}]
  %s1 = inlined_call_operand.vmem [shape: bf16[3,128,128], index: 1, kind: input, shape index: {}]
  %s2 = inlined_call_operand.vmem [shape: f32[1,128], index: 2, kind: input, shape index: {}]
  %s3 = inlined_call_operand.vmem [shape: f32[1,128], index: 3, kind: input, shape index: {}]
  %s4 = inlined_call_operand.vmem [shape: bf16[2,16,128], index: 4, kind: output, shape index: {0}]
  %s5 = inlined_call_operand.vmem [shape: f32[1,8,128], index: 5, kind: output, shape index: {1}]
  %6 = xla_tuple %s4, %s5
  %s7 = sld [smem:[#allocation0]]
  $region34: #{basic_block_dec.4} parent=0
    _
  %s9 = ssub.s32 1, %s7
  %s10 = scalar_select 0, %s9, %s7
  // Predicated region
  $region2: #{basic_block_dec.4} parent=0 // pred_check
    _
  $region3: #{basic_block_dec.4} parent=0 // pred_check_branch
    %12 = sbr.rel (0) target = $region5
  $region4: #{basic_block_dec.4} parent=0 // pred_region
    _
  $region5: #{basic_block_dec.4} parent=0 // pred_fallthru
    _
  // Predicated region
  $region6: #{basic_block_dec.4} parent=0 // pred_check
    _
  $region7: #{basic_block_dec.4} parent=0 // pred_check_branch
    %14 = sbr.rel (0) target = $region9
  $region8: #{basic_block_dec.4} parent=0 // pred_region
    _
  $region9: #{basic_block_dec.4} parent=0 // pred_fallthru
    _
  // Predicated region
  $region10: #{basic_block_dec.4} parent=0 // pred_check
    _
  $region11: #{basic_block_dec.4} parent=0 // pred_check_branch
    %16 = sbr.rel (0) target = $region13
  $region12: #{basic_block_dec.4} parent=0 // pred_region
    _
  $region13: #{basic_block_dec.4} parent=0 // pred_fallthru
    _
  // Predicated region
  $region14: #{basic_block_dec.4} parent=0 // pred_check
    _
  $region15: #{basic_block_dec.4} parent=0 // pred_check_branch
    %18 = sbr.rel (0) target = $region17
  $region16: #{basic_block_dec.4} parent=0 // pred_region
    _
  $region17: #{basic_block_dec.4} parent=0 // pred_fallthru
    _
  %v20 = vld [vmem:[%s0] sm:$0xf]
  %v21 = vld [vmem:[%s0 + $0x4] sm:$0xf]
  %v22 = vld [vmem:[%s0 + $0x8] sm:$0xf]
  %v23 = vld [vmem:[%s0 + $0xc] sm:$0xf]
  %v24 = vunpack.c.l.bf16 %v20
  %v25 = vunpack.c.l.bf16 %v21
  %v26 = vunpack.c.l.bf16 %v22
  %v27 = vunpack.c.l.bf16 %v23
  %v28 = vld [vmem:[%s2] sm:$0x1]
  %v30 = vlaneseq
  %v31 = vshrl.u32 %v30, 7
  %v32 = vsub.s32 0, %v31
  %v33 = vrot.slane %v28, %v32
  %v35 = vmul.f32 %v24, %v33
  %v36 = vmul.f32 %v25, %v33
  %v37 = vmul.f32 %v26, %v33
  %v38 = vmul.f32 %v27, %v33
  %v39 = vld [vmem:[%s3] sm:$0x1]
  %v41 = vlaneseq
  %v42 = vshrl.u32 %v41, 7
  %v43 = vsub.s32 0, %v42
  %v44 = vrot.slane %v39, %v43
  %v46 = vadd.f32 %v35, %v44
  %v47 = vadd.f32 %v36, %v44
  %v48 = vadd.f32 %v37, %v44
  %v49 = vadd.f32 %v38, %v44
  %v50 = vmax.f32 %v46, 0.0
  %v51 = vmax.f32 %v47, 0.0
  %v52 = vmax.f32 %v48, 0.0
  %v53 = vmax.f32 %v49, 0.0
  %v54 = vpack.c.bf16 %v51, %v50
  %v55 = vpack.c.bf16 %v53, %v52
  %vm56 = vcmask 1040384
  %vm57 = vsmask.f32 256
  %vm58 = vmand %vm56, %vm57
  %v59 = vld [vmem:[#allocation2] sm:$0x1]
  %v60 = vsel %vm58, 0, %v59
  %61 = vst [vmem:[#allocation2] sm:$0x1] %v60
  %v62 = vld [vmem:[#allocation2 + $0xc] sm:$0x1]
  %v63 = vsel %vm58, 0, %v62
  %64 = vst [vmem:[#allocation2 + $0xc] sm:$0x1] %v63
  %vm65 = vsmask.f32 7938
  %vm66 = vmand %vm56, %vm65
  %v67 = vld [vmem:[#allocation2 + $0x8] sm:$0x1]
  %v68 = vsel %vm66, 0, %v67
  %69 = vst [vmem:[#allocation2 + $0x8] sm:$0x1] %v68
  %v70 = vld [vmem:[#allocation2 + $0x14] sm:$0x1]
  %v71 = vsel %vm66, 0, %v70
  %72 = vst [vmem:[#allocation2 + $0x14] sm:$0x1] %v71
  %v75 = vunpack.c.l.b16 %v54
  %v76 = vunpack.c.h.b16 %v54
  %v77 = vunpack.c.l.b16 %v55
  %v78 = vunpack.c.h.b16 %v55
  %v79 = vpack.c.b16 %v75, %v75
  %v80 = vpack.c.b16 %v76, %v76
  %v81 = vpack.c.b16 %v77, %v77
  %v82 = vpack.c.b16 %v78, %v78
  %vm83 = vsmask.f32 4368
  %vm84 = vmor %vm57, %vm83
  %v86 = vshrl.u32 %v79, 16
  %v88 = vrot.slane %v86, 7
  %v89 = vshll.u32 %v79, 16
  %v91 = vor.u32 %v88, %v89
  %v92 = vrot.slane %v88, 4
  %v94 = vshrl.u32 %v80, 16
  %v96 = vrot.slane %v94, 7
  %v97 = vshll.u32 %v80, 16
  %v99 = vor.u32 %v96, %v97
  %v100 = vsel %vm84, %v92, %v99
  %v101 = vrot.slane %v96, 4
  %v103 = vshrl.u32 %v81, 16
  %v105 = vrot.slane %v103, 7
  %v106 = vshll.u32 %v81, 16
  %v108 = vor.u32 %v105, %v106
  %v109 = vrot.slane %v105, 4
  %v111 = vshrl.u32 %v82, 16
  %v113 = vrot.slane %v111, 7
  %v114 = vshll.u32 %v82, 16
  %v116 = vor.u32 %v113, %v114
  %v117 = vsel %vm84, %v109, %v116
  %v118 = vrot.slane %v113, 4
  %vm125 = vcmask 1043456
  %vm126 = vmand %vm125, %vm65
  %v127 = vld [vmem:[#allocation2] sm:$0xf]
  %v128 = vsel %vm126, %v91, %v127
  %129 = vst [vmem:[#allocation2] sm:$0xf] %v128
  %130 = vst [vmem:[#allocation2 + $0x4] sm:$0xf] %v100
  %v131 = vld [vmem:[#allocation2 + $0x8] sm:$0x1]
  %v132 = vsel %vm58, %v101, %v131
  %133 = vst [vmem:[#allocation2 + $0x8] sm:$0x1] %v132
  %v134 = vld [vmem:[#allocation2 + $0xc] sm:$0xf]
  %v135 = vsel %vm126, %v108, %v134
  %136 = vst [vmem:[#allocation2 + $0xc] sm:$0xf] %v135
  %137 = vst [vmem:[#allocation2 + $0x10] sm:$0xf] %v117
  %v138 = vld [vmem:[#allocation2 + $0x14] sm:$0x1]
  %v139 = vsel %vm58, %v118, %v138
  %140 = vst [vmem:[#allocation2 + $0x14] sm:$0x1] %v139
  %v141 = vld [vmem:[#allocation2] sm:$0xe]
  %v142 = vld [vmem:[#allocation2 + $0x4] sm:$0xf]
  %v143 = vld [vmem:[#allocation2 + $0x8] sm:$0x1]
  %v144 = vld [vmem:[#allocation2 + $0xc] sm:$0xe]
  %v145 = vld [vmem:[#allocation2 + $0x10] sm:$0xf]
  %v146 = vld [vmem:[#allocation2 + $0x14] sm:$0x1]
  %vm153 = vcmask 1042432
  %vm154 = vcmask 1046532
  %vm155 = vmor %vm153, %vm154
  %v156 = vrot.slane %v141, 5
  %v157 = vrot.slane %v156, 4
  %v158 = vrot.slane %v142, 5
  %v159 = vsel %vm155, %v157, %v158
  %v160 = vrot.slane %v158, 4
  %v161 = vrot.slane %v143, 5
  %v162 = vsel %vm155, %v160, %v161
  %v163 = vrot.slane %v144, 5
  %v164 = vrot.slane %v163, 4
  %v165 = vrot.slane %v145, 5
  %v166 = vsel %vm155, %v164, %v165
  %v167 = vrot.slane %v165, 4
  %v168 = vrot.slane %v146, 5
  %v169 = vsel %vm155, %v167, %v168
  %v170 = vld [vmem:[#allocation2] sm:$0xf]
  %v171 = vld [vmem:[#allocation2 + $0xc] sm:$0xf]
  %v172 = vld [vmem:[%s1] sm:$0xf]
  %v173 = vld [vmem:[%s1 + $0x4] sm:$0xf]
  %v174 = vld [vmem:[%s1 + $0x8] sm:$0xf]
  %v175 = vld [vmem:[%s1 + $0xc] sm:$0xf]
  %v176 = vld [vmem:[%s1 + $0x10] sm:$0xf]
  %v177 = vld [vmem:[%s1 + $0x14] sm:$0xf]
  %v178 = vld [vmem:[%s1 + $0x18] sm:$0xf]
  %v179 = vld [vmem:[%s1 + $0x1c] sm:$0xf]
  %v180 = vld [vmem:[%s1 + $0x20] sm:$0xf]
  %v181 = vld [vmem:[%s1 + $0x24] sm:$0xf]
  %v182 = vld [vmem:[%s1 + $0x28] sm:$0xf]
  %v183 = vld [vmem:[%s1 + $0x2c] sm:$0xf]
  %v184 = vld [vmem:[%s1 + $0x30] sm:$0xf]
  %v185 = vld [vmem:[%s1 + $0x34] sm:$0xf]
  %v186 = vld [vmem:[%s1 + $0x38] sm:$0xf]
  %v187 = vld [vmem:[%s1 + $0x3c] sm:$0xf]
  %s188 = scalar_lea.vmem %s1, 64
  %v189 = vld [vmem:[%s188] sm:$0xf]
  %v190 = vld [vmem:[%s188 + $0x4] sm:$0xf]
  %v191 = vld [vmem:[%s188 + $0x8] sm:$0xf]
  %v192 = vld [vmem:[%s188 + $0xc] sm:$0xf]
  %v193 = vld [vmem:[%s188 + $0x10] sm:$0xf]
  %v194 = vld [vmem:[%s188 + $0x14] sm:$0xf]
  %v195 = vld [vmem:[%s188 + $0x18] sm:$0xf]
  %v196 = vld [vmem:[%s188 + $0x1c] sm:$0xf]
  %v197 = vld [vmem:[%s188 + $0x20] sm:$0xf]
  %v198 = vld [vmem:[%s188 + $0x24] sm:$0xf]
  %v199 = vld [vmem:[%s188 + $0x28] sm:$0xf]
  %v200 = vld [vmem:[%s188 + $0x2c] sm:$0xf]
  %v201 = vld [vmem:[%s188 + $0x30] sm:$0xf]
  %v202 = vld [vmem:[%s188 + $0x34] sm:$0xf]
  %v203 = vld [vmem:[%s188 + $0x38] sm:$0xf]
  %v204 = vld [vmem:[%s188 + $0x3c] sm:$0xf]
  %v221 = vunpack.c.l.b16 %v189
  %v222 = vunpack.c.l.b16 %v190
  %v223 = vunpack.c.l.b16 %v191
  %v224 = vunpack.c.l.b16 %v192
  %v225 = vunpack.c.l.b16 %v193
  %v226 = vunpack.c.l.b16 %v194
  %v227 = vunpack.c.l.b16 %v195
  %v228 = vunpack.c.l.b16 %v196
  %v229 = vunpack.c.l.b16 %v197
  %v230 = vunpack.c.l.b16 %v198
  %v231 = vunpack.c.l.b16 %v199
  %v232 = vunpack.c.l.b16 %v200
  %v233 = vunpack.c.l.b16 %v201
  %v234 = vunpack.c.l.b16 %v202
  %v235 = vunpack.c.l.b16 %v203
  %v236 = vunpack.c.l.b16 %v204
  %v237 = vpack.c.b16 %v222, %v221
  %v238 = vpack.c.b16 %v224, %v223
  %v239 = vpack.c.b16 %v226, %v225
  %v240 = vpack.c.b16 %v228, %v227
  %v241 = vpack.c.b16 %v230, %v229
  %v242 = vpack.c.b16 %v232, %v231
  %v243 = vpack.c.b16 %v234, %v233
  %v244 = vpack.c.b16 %v236, %v235
  %253 = vmatprep.subr.bf16.mxu0 0
  %254 = vmatpush1.bf16.msra.mxu0 %v237
  %255 = vmatprep.subr.bf16.mxu0 0
  %256 = vmatpush1.bf16.msra.mxu0 %v238
  %257 = vmatprep.subr.bf16.mxu0 0
  %258 = vmatpush1.bf16.msra.mxu0 %v239
  %259 = vmatprep.subr.bf16.mxu0 0
  %260 = vmatpush1.bf16.msra.mxu0 %v240
  %261 = vmatprep.subr.bf16.mxu0 0
  %262 = vmatpush1.bf16.msra.mxu0 %v241
  %263 = vmatprep.subr.bf16.mxu0 0
  %264 = vmatpush1.bf16.msra.mxu0 %v242
  %265 = vmatprep.subr.bf16.mxu0 0
  %266 = vmatpush1.bf16.msra.mxu0 %v243
  %267 = vmatprep.subr.bf16.mxu0 0
  %268 = vmatpush1.bf16.msra.mxu0 %v244
  %269 = vmatprep.subr.bf16.mxu0 0
  %270 = vmatpush1.bf16.msra.mxu0 0
  %271 = vmatprep.subr.bf16.mxu0 0
  %272 = vmatpush1.bf16.msra.mxu0 0
  %273 = vmatprep.subr.bf16.mxu0 0
  %274 = vmatpush1.bf16.msra.mxu0 0
  %275 = vmatprep.subr.bf16.mxu0 0
  %276 = vmatpush1.bf16.msra.mxu0 0
  %277 = vmatprep.subr.bf16.mxu0 0
  %278 = vmatpush1.bf16.msra.mxu0 0
  %279 = vmatprep.subr.bf16.mxu0 0
  %280 = vmatpush1.bf16.msra.mxu0 0
  %281 = vmatprep.subr.bf16.mxu0 0
  %282 = vmatpush1.bf16.msra.mxu0 0
  %283 = vmatprep.subr.bf16.mxu0 0
  %284 = vmatpush1.bf16.msra.mxu0 0
  %285 = vmatprep.mubr.bf16.mxu0 0
  %286 = vmatmul.mubr.bf16.gmra.mrb[0].mxu0 %v54
  %v287 = vpop.f32.mrb[0].mxu0
  %v288 = vadd.f32 0.0, %v287
  %v289 = vpop.f32.mrb[0].mxu0
  %v290 = vpop.f32.mrb[0].mxu0
  %v291 = vadd.f32 0.0, %v290
  %v292 = vpop.f32.mrb[0].mxu0
  %293 = vmatprep.mubr.bf16.mxu0 0
  %294 = vmatmul.mubr.bf16.gmra.mrb[0].mxu0 %v55
  %v295 = vpop.f32.mrb[0].mxu0
  %v296 = vadd.f32 0.0, %v295
  %v297 = vpop.f32.mrb[0].mxu0
  %v298 = vpop.f32.mrb[0].mxu0
  %v299 = vadd.f32 0.0, %v298
  %v300 = vpop.f32.mrb[0].mxu0
  %301 = vdwg.mxu0
  %v302 = vunpack.c.l.b16 %v159
  %v303 = vunpack.c.l.b16 %v162
  %v304 = vunpack.c.l.b16 %v166
  %v305 = vunpack.c.l.b16 %v169
  %v306 = vpack.c.b16 %v303, %v302
  %v307 = vpack.c.b16 %v305, %v304
  %v326 = vunpack.c.l.b16 %v172
  %v327 = vunpack.c.l.b16 %v173
  %v328 = vunpack.c.l.b16 %v174
  %v329 = vunpack.c.l.b16 %v175
  %v330 = vunpack.c.l.b16 %v176
  %v331 = vunpack.c.l.b16 %v177
  %v332 = vunpack.c.l.b16 %v178
  %v333 = vunpack.c.l.b16 %v179
  %v334 = vunpack.c.l.b16 %v180
  %v335 = vunpack.c.l.b16 %v181
  %v336 = vunpack.c.l.b16 %v182
  %v337 = vunpack.c.l.b16 %v183
  %v338 = vunpack.c.l.b16 %v184
  %v339 = vunpack.c.l.b16 %v185
  %v340 = vunpack.c.l.b16 %v186
  %v341 = vunpack.c.l.b16 %v187
  %v342 = vpack.c.b16 %v327, %v326
  %v343 = vpack.c.b16 %v329, %v328
  %v344 = vpack.c.b16 %v331, %v330
  %v345 = vpack.c.b16 %v333, %v332
  %v346 = vpack.c.b16 %v335, %v334
  %v347 = vpack.c.b16 %v337, %v336
  %v348 = vpack.c.b16 %v339, %v338
  %v349 = vpack.c.b16 %v341, %v340
  %358 = vmatprep.subr.bf16.mxu0 0
  %359 = vmatpush1.bf16.msra.mxu0 %v342
  %360 = vmatprep.subr.bf16.mxu0 0
  %361 = vmatpush1.bf16.msra.mxu0 %v343
  %362 = vmatprep.subr.bf16.mxu0 0
  %363 = vmatpush1.bf16.msra.mxu0 %v344
  %364 = vmatprep.subr.bf16.mxu0 0
  %365 = vmatpush1.bf16.msra.mxu0 %v345
  %366 = vmatprep.subr.bf16.mxu0 0
  %367 = vmatpush1.bf16.msra.mxu0 %v346
  %368 = vmatprep.subr.bf16.mxu0 0
  %369 = vmatpush1.bf16.msra.mxu0 %v347
  %370 = vmatprep.subr.bf16.mxu0 0
  %371 = vmatpush1.bf16.msra.mxu0 %v348
  %372 = vmatprep.subr.bf16.mxu0 0
  %373 = vmatpush1.bf16.msra.mxu0 %v349
  %374 = vmatprep.subr.bf16.mxu0 0
  %375 = vmatpush1.bf16.msra.mxu0 0
  %376 = vmatprep.subr.bf16.mxu0 0
  %377 = vmatpush1.bf16.msra.mxu0 0
  %378 = vmatprep.subr.bf16.mxu0 0
  %379 = vmatpush1.bf16.msra.mxu0 0
  %380 = vmatprep.subr.bf16.mxu0 0
  %381 = vmatpush1.bf16.msra.mxu0 0
  %382 = vmatprep.subr.bf16.mxu0 0
  %383 = vmatpush1.bf16.msra.mxu0 0
  %384 = vmatprep.subr.bf16.mxu0 0
  %385 = vmatpush1.bf16.msra.mxu0 0
  %386 = vmatprep.subr.bf16.mxu0 0
  %387 = vmatpush1.bf16.msra.mxu0 0
  %388 = vmatprep.subr.bf16.mxu0 0
  %389 = vmatpush1.bf16.msra.mxu0 0
  %390 = vmatprep.mubr.bf16.mxu0 0
  %391 = vmatmul.mubr.bf16.gmra.mrb[0].mxu0 %v306
  %v392 = vpop.f32.mrb[0].mxu0
  %v393 = vadd.f32 %v288, %v392
  %v394 = vpop.f32.mrb[0].mxu0
  %v395 = vpop.f32.mrb[0].mxu0
  %v396 = vadd.f32 %v291, %v395
  %v397 = vpop.f32.mrb[0].mxu0
  %398 = vmatprep.mubr.bf16.mxu0 0
  %399 = vmatmul.mubr.bf16.gmra.mrb[0].mxu0 %v307
  %v400 = vpop.f32.mrb[0].mxu0
  %v401 = vadd.f32 %v296, %v400
  %v402 = vpop.f32.mrb[0].mxu0
  %v403 = vpop.f32.mrb[0].mxu0
  %v404 = vadd.f32 %v299, %v403
  %v405 = vpop.f32.mrb[0].mxu0
  %406 = vdwg.mxu0
  %s407 = scalar_lea.vmem %s1, 128
  %v408 = vld [vmem:[%s407] sm:$0xf]
  %v409 = vld [vmem:[%s407 + $0x4] sm:$0xf]
  %v410 = vld [vmem:[%s407 + $0x8] sm:$0xf]
  %v411 = vld [vmem:[%s407 + $0xc] sm:$0xf]
  %v412 = vld [vmem:[%s407 + $0x10] sm:$0xf]
  %v413 = vld [vmem:[%s407 + $0x14] sm:$0xf]
  %v414 = vld [vmem:[%s407 + $0x18] sm:$0xf]
  %v415 = vld [vmem:[%s407 + $0x1c] sm:$0xf]
  %v416 = vld [vmem:[%s407 + $0x20] sm:$0xf]
  %v417 = vld [vmem:[%s407 + $0x24] sm:$0xf]
  %v418 = vld [vmem:[%s407 + $0x28] sm:$0xf]
  %v419 = vld [vmem:[%s407 + $0x2c] sm:$0xf]
  %v420 = vld [vmem:[%s407 + $0x30] sm:$0xf]
  %v421 = vld [vmem:[%s407 + $0x34] sm:$0xf]
  %v422 = vld [vmem:[%s407 + $0x38] sm:$0xf]
  %v423 = vld [vmem:[%s407 + $0x3c] sm:$0xf]
  %v426 = vunpack.c.l.b16 %v170
  %v427 = vunpack.c.l.b16 %v142
  %v428 = vunpack.c.l.b16 %v171
  %v429 = vunpack.c.l.b16 %v145
  %v430 = vpack.c.b16 %v427, %v426
  %v431 = vpack.c.b16 %v429, %v428
  %v450 = vunpack.c.l.b16 %v408
  %v451 = vunpack.c.l.b16 %v409
  %v452 = vunpack.c.l.b16 %v410
  %v453 = vunpack.c.l.b16 %v411
  %v454 = vunpack.c.l.b16 %v412
  %v455 = vunpack.c.l.b16 %v413
  %v456 = vunpack.c.l.b16 %v414
  %v457 = vunpack.c.l.b16 %v415
  %v458 = vunpack.c.l.b16 %v416
  %v459 = vunpack.c.l.b16 %v417
  %v460 = vunpack.c.l.b16 %v418
  %v461 = vunpack.c.l.b16 %v419
  %v462 = vunpack.c.l.b16 %v420
  %v463 = vunpack.c.l.b16 %v421
  %v464 = vunpack.c.l.b16 %v422
  %v465 = vunpack.c.l.b16 %v423
  %v466 = vpack.c.b16 %v451, %v450
  %v467 = vpack.c.b16 %v453, %v452
  %v468 = vpack.c.b16 %v455, %v454
  %v469 = vpack.c.b16 %v457, %v456
  %v470 = vpack.c.b16 %v459, %v458
  %v471 = vpack.c.b16 %v461, %v460
  %v472 = vpack.c.b16 %v463, %v462
  %v473 = vpack.c.b16 %v465, %v464
  %482 = vmatprep.subr.bf16.mxu0 0
  %483 = vmatpush1.bf16.msra.mxu0 %v466
  %484 = vmatprep.subr.bf16.mxu0 0
  %485 = vmatpush1.bf16.msra.mxu0 %v467
  %486 = vmatprep.subr.bf16.mxu0 0
  %487 = vmatpush1.bf16.msra.mxu0 %v468
  %488 = vmatprep.subr.bf16.mxu0 0
  %489 = vmatpush1.bf16.msra.mxu0 %v469
  %490 = vmatprep.subr.bf16.mxu0 0
  %491 = vmatpush1.bf16.msra.mxu0 %v470
  %492 = vmatprep.subr.bf16.mxu0 0
  %493 = vmatpush1.bf16.msra.mxu0 %v471
  %494 = vmatprep.subr.bf16.mxu0 0
  %495 = vmatpush1.bf16.msra.mxu0 %v472
  %496 = vmatprep.subr.bf16.mxu0 0
  %497 = vmatpush1.bf16.msra.mxu0 %v473
  %498 = vmatprep.subr.bf16.mxu0 0
  %499 = vmatpush1.bf16.msra.mxu0 0
  %500 = vmatprep.subr.bf16.mxu0 0
  %501 = vmatpush1.bf16.msra.mxu0 0
  %502 = vmatprep.subr.bf16.mxu0 0
  %503 = vmatpush1.bf16.msra.mxu0 0
  %504 = vmatprep.subr.bf16.mxu0 0
  %505 = vmatpush1.bf16.msra.mxu0 0
  %506 = vmatprep.subr.bf16.mxu0 0
  %507 = vmatpush1.bf16.msra.mxu0 0
  %508 = vmatprep.subr.bf16.mxu0 0
  %509 = vmatpush1.bf16.msra.mxu0 0
  %510 = vmatprep.subr.bf16.mxu0 0
  %511 = vmatpush1.bf16.msra.mxu0 0
  %512 = vmatprep.subr.bf16.mxu0 0
  %513 = vmatpush1.bf16.msra.mxu0 0
  %514 = vmatprep.mubr.bf16.mxu0 0
  %515 = vmatmul.mubr.bf16.gmra.mrb[0].mxu0 %v430
  %v516 = vpop.f32.mrb[0].mxu0
  %v517 = vadd.f32 0.0, %v516
  %v518 = vpop.f32.mrb[0].mxu0
  %v519 = vpop.f32.mrb[0].mxu0
  %v520 = vadd.f32 0.0, %v519
  %v521 = vpop.f32.mrb[0].mxu0
  %522 = vmatprep.mubr.bf16.mxu0 0
  %523 = vmatmul.mubr.bf16.gmra.mrb[0].mxu0 %v431
  %v524 = vpop.f32.mrb[0].mxu0
  %v525 = vadd.f32 0.0, %v524
  %v526 = vpop.f32.mrb[0].mxu0
  %v527 = vpop.f32.mrb[0].mxu0
  %v528 = vadd.f32 0.0, %v527
  %v529 = vpop.f32.mrb[0].mxu0
  %530 = vdwg.mxu0
  %v531 = vadd.f32 %v393, %v517
  %v532 = vadd.f32 %v396, %v520
  %v533 = vadd.f32 %v401, %v525
  %v534 = vadd.f32 %v404, %v528
  %v535 = vpack.c.bf16 %v532, %v531
  %v536 = vpack.c.bf16 %v534, %v533
  %v539 = vunpack.c.l.b16 %v535
  %v540 = vunpack.c.h.b16 %v535
  %v541 = vunpack.c.l.b16 %v536
  %v542 = vunpack.c.h.b16 %v536
  %v543 = vpack.c.b16 %v539, %v539
  %v544 = vpack.c.b16 %v540, %v540
  %v545 = vpack.c.b16 %v541, %v541
  %v546 = vpack.c.b16 %v542, %v542
  %551 = vst [vmem:[%s4] sm:$0xf] %v543
  %552 = vst [vmem:[%s4 + $0x4] sm:$0xf] %v544
  %553 = vst [vmem:[%s4 + $0x8] sm:$0xf] %v545
  %554 = vst [vmem:[%s4 + $0xc] sm:$0xf] %v546
  %v555 = vadd.f32 %v531, %v532
  %v556 = vadd.f32 %v555, %v533
  %v557 = vadd.f32 %v556, %v534
  %v558 = vrot.slane %v557, 4
  %v559 = vadd.f32 %v557, %v558
  %v560 = vrot.slane %v559, 2
  %v561 = vadd.f32 %v559, %v560
  %v562 = vrot.slane %v561, 1
  %v563 = vadd.f32 %v561, %v562
  %v564 = vmul.f32 %v531, %v531
  %v565 = vmul.f32 %v532, %v532
  %v566 = vmul.f32 %v533, %v533
  %v567 = vmul.f32 %v534, %v534
  %v568 = vadd.f32 %v564, %v565
  %v569 = vadd.f32 %v568, %v566
  %v570 = vadd.f32 %v569, %v567
  %v571 = vrot.slane %v570, 4
  %v572 = vadd.f32 %v570, %v571
  %v573 = vrot.slane %v572, 2
  %v574 = vadd.f32 %v572, %v573
  %v575 = vrot.slane %v574, 1
  %v576 = vadd.f32 %v574, %v575
  %v577 = vlaneseq
  %v578 = vshrl.u32 %v577, 7
  %vm579 = vcmp.eq.s32.totalorder %v578, 0
  %vm580 = vcmp.eq.s32.totalorder %v578, 1
  %v581 = vsel %vm580, %v576, 0.0
  %v582 = vsel %vm579, %v563, %v581
  %583 = vst [vmem:[%s5] sm:$0xff] %v582
  // Predicated region
  $region18: #{basic_block_dec.4} parent=0 // pred_check
    _
  $region19: #{basic_block_dec.4} parent=0 // pred_check_branch
    %585 = sbr.rel (0) target = $region21
  $region20: #{basic_block_dec.4} parent=0 // pred_region
    _
  $region21: #{basic_block_dec.4} parent=0 // pred_fallthru
    _
  // Predicated region
  $region22: #{basic_block_dec.4} parent=0 // pred_check
    _
  $region23: #{basic_block_dec.4} parent=0 // pred_check_branch
    %587 = sbr.rel (0) target = $region25
  $region24: #{basic_block_dec.4} parent=0 // pred_region
    _
  $region25: #{basic_block_dec.4} parent=0 // pred_fallthru
    _
  // Predicated region
  $region26: #{basic_block_dec.4} parent=0 // pred_check
    _
  $region27: #{basic_block_dec.4} parent=0 // pred_check_branch
    %589 = sbr.rel (0) target = $region29
  $region28: #{basic_block_dec.4} parent=0 // pred_region
    _
  $region29: #{basic_block_dec.4} parent=0 // pred_fallthru
    _
  // Predicated region
  $region30: #{basic_block_dec.4} parent=0 // pred_check
    _
  $region31: #{basic_block_dec.4} parent=0 // pred_check_branch
    %591 = sbr.rel (0) target = $region33
  $region32: #{basic_block_dec.4} parent=0 // pred_region
    _
  $region33: #{basic_block_dec.4} parent=0 // pred_fallthru
    _

</llo_original>
